<compile_context>
chip_gen: v5e
topology: v5e:2x2
jax: 0.10.0
libtpu: 0.0.40
codegen_flags: <defaults>
</compile_context>

<pallas_src>
import jax
import jax.numpy as jnp
from jax.experimental import pallas as pl
from jax.experimental.pallas import tpu as pltpu

_LANE = 128
_SUBLANE = 8
_VPU_INP_MAX = 8   # use VPU broadcast-FMA for the K=inp projections when inp <= this


def _round_up(x, m):
    return ((x + m - 1) // m) * m


def _cdiv(a, b):
    return -(-a // b)


def _stable_softplus(v):
    # Hand-rolled stable softplus (cheaper on the VPU/EUP than jax.nn.softplus).
    return jnp.maximum(v, 0.0) + jnp.log(1.0 + jnp.exp(-jnp.abs(v)))


# The PyTorch module takes an `activation` argument; support the common ones
# (a custom callable can also be passed directly).
_ACTIVATIONS = {
    "relu": lambda v: jnp.maximum(v, 0.0),
    "softplus": _stable_softplus,
    "elu": jax.nn.elu,
    "tanh": jnp.tanh,
    "sigmoid": jax.nn.sigmoid,
}


# --------------------------------------------------------------------------
# Projection helpers (x_in @ W + b with K = inp).
# --------------------------------------------------------------------------
def _make_vpu_projector(x_f32, inp, width, hoist):
    """VPU broadcast-FMA projector: x_in @ W + b without touching the MXU."""
    tb = x_f32.shape[0]
    if hoist:
        # Hoisted lane-broadcasts of each x column (reused across layers).
        xb = [jnp.broadcast_to(x_f32[:, k:k + 1], (tb, width)) for k in range(inp)]

    def proj(w2d, brow):                     # w2d: (inp, width), brow: (1, width)
        acc = jnp.broadcast_to(brow.astype(jnp.float32), (tb, width))
        for k in range(inp):
            xk = xb[k] if hoist else jnp.broadcast_to(x_f32[:, k:k + 1], (tb, width))
            acc = acc + xk * w2d[k, :].astype(jnp.float32)
        return acc

    return proj


def _make_mxu_projector(x_f32):
    """MXU fallback for larger inp."""
    def proj(w2d, brow):
        return (jnp.dot(x_f32.astype(w2d.dtype), w2d,
                        preferred_element_type=jnp.float32)
                + brow.astype(jnp.float32))
    return proj


# --------------------------------------------------------------------------
# Kernels.
# --------------------------------------------------------------------------
def _make_resident_kernel(num_layers, inp, hp, outp, act_fn, compute_dtype, inp_on_vpu):
    """All layer weights resident in VMEM; 1-D grid over batch tiles."""

    def kernel(x_ref, w1_ref, b1_ref, w2x_ref, w2in_ref, b2_ref,
               w3x_ref, w3in_ref, b3_ref, o_ref):
        x_f32 = x_ref[...].astype(jnp.float32)           # (TB, inp)

        if inp_on_vpu:
            proj_h = _make_vpu_projector(x_f32, inp, hp, hoist=True)
            proj_o = _make_vpu_projector(x_f32, inp, outp, hoist=False)
        else:
            proj_h = proj_o = _make_mxu_projector(x_f32)

        # fc1 + activation (bias / activation stay f32 on the VPU).
        h = act_fn(proj_h(w1_ref[...], b1_ref[...]))

        # Hidden layers: Linear(cat([h, x_in], 1)) == h @ Wx + (x_in @ Win + b)
        # NOTE: static unroll; deep-L configurations take the streamed kernel
        # below instead, which bounds live ranges via a grid axis over layers.
        for l in range(num_layers):
            h = act_fn(jnp.dot(h.astype(compute_dtype), w2x_ref[l],
                               preferred_element_type=jnp.float32)
                       + proj_h(w2in_ref[l], b2_ref[l]))

        # fc3 (no activation).  Output block is lane-dense (OUTp = k*128).
        out = (jnp.dot(h.astype(compute_dtype), w3x_ref[...],
                       preferred_element_type=jnp.float32)
               + proj_o(w3in_ref[...], b3_ref[...]))
        o_ref[...] = out.astype(o_ref.dtype)

    return kernel


def _make_streamed_kernel(inp, hp, outp, act_fn, compute_dtype, inp_on_vpu):
    """Deep-L variant: 2-D grid (batch tiles, layers); w2x streamed per layer,
    h carried in a persistent VMEM scratch."""

    def kernel(x_ref, w1_ref, b1_ref, w2x_ref, w2in_ref, b2_ref,
               w3x_ref, w3in_ref, b3_ref, o_ref, h_ref):
        l = pl.program_id(1)
        x_f32 = x_ref[...].astype(jnp.float32)

        if inp_on_vpu:
            proj_h = _make_vpu_projector(x_f32, inp, hp, hoist=False)
            proj_o = _make_vpu_projector(x_f32, inp, outp, hoist=False)
        else:
            proj_h = proj_o = _make_mxu_projector(x_f32)

        @pl.when(l == 0)
        def _():
            h_ref[...] = act_fn(proj_h(w1_ref[...], b1_ref[...]))

        h = act_fn(jnp.dot(h_ref[...].astype(compute_dtype), w2x_ref[0],
                           preferred_element_type=jnp.float32)
                   + proj_h(w2in_ref[0], b2_ref[0]))
        h_ref[...] = h

        @pl.when(l == pl.num_programs(1) - 1)
        def _():
            out = (jnp.dot(h.astype(compute_dtype), w3x_ref[...],
                           preferred_element_type=jnp.float32)
                   + proj_o(w3in_ref[...], b3_ref[...]))
            o_ref[...] = out.astype(o_ref.dtype)

    return kernel


# --------------------------------------------------------------------------
# Wrapper.
# --------------------------------------------------------------------------
def icnn_forward_pallas(x, params, *, activation="relu",
                        compute_dtype=jnp.bfloat16, block_b=256,
                        force_stream=None):
    """ICNN forward pass with a fused Pallas TPU kernel.

    x:       (B, inp) float32
    params:  dict with w1,b1, (w2x,w2in,b2) lists, w3x,w3in,b3
             weights pre-transposed to (in_features, out_features), biases (1, N).
    """
    B, inp = x.shape
    H = params["w1"].shape[1]
    out_dim = params["w3x"].shape[1]
    num_layers = len(params["w2x"])
    assert num_layers >= 1

    Hp = _round_up(H, _LANE)
    OUTp = _round_up(out_dim, _LANE)
    cdt = jnp.dtype(compute_dtype)
    act_fn = activation if callable(activation) else _ACTIVATIONS[activation]
    inp_on_vpu = inp <= _VPU_INP_MAX

    # ---- generation-aware VMEM size (v5e/v6e: 128 MiB, v7x: 64 MiB / TC) ----
    try:
        vmem_phys = int(pltpu.get_tpu_info().vmem_capacity_bytes)
    except Exception:
        vmem_phys = 64 << 20   # conservative (v7x per-TC)

    # ---- batch tiling: >= 2 grid steps when the batch allows (dual-TC v7x) ----
    b8 = _round_up(B, _SUBLANE)
    block_b = _round_up(min(block_b, b8), _SUBLANE)
    if _cdiv(b8, block_b) < 2 and b8 > _SUBLANE:
        block_b = _round_up(_cdiv(b8, 2), _SUBLANE)
    # (An even number of steps balances the two v7x TensorCores best; we only
    #  guarantee >= 2 here to avoid excessive batch padding.)
    n_btiles = _cdiv(b8, block_b)
    Bp = n_btiles * block_b
    x_p = x if Bp == B else jnp.pad(x, ((0, Bp - B), (0, 0)))

    # ---- padded / split weights ----------------------------------------------
    def pad2(a, rows, cols):
        return jnp.pad(a, ((0, rows - a.shape[0]), (0, cols - a.shape[1])))

    proj_dtype = jnp.float32 if inp_on_vpu else cdt   # VPU path keeps f32 weights
    w1 = pad2(params["w1"], inp, Hp).astype(proj_dtype)                        # (inp, Hp)
    b1 = pad2(params["b1"], 1, Hp).astype(jnp.float32)                         # (1, Hp)
    w2x = jnp.stack([pad2(w, Hp, Hp) for w in params["w2x"]]).astype(cdt)      # (L, Hp, Hp)
    w2in = jnp.stack([pad2(w, inp, Hp) for w in params["w2in"]]
                     ).astype(proj_dtype)                                      # (L, inp, Hp)
    b2 = jnp.stack([pad2(b, 1, Hp) for b in params["b2"]]).astype(jnp.float32) # (L, 1, Hp)
    w3x = pad2(params["w3x"], Hp, OUTp).astype(cdt)                            # (Hp, OUTp)
    w3in = pad2(params["w3in"], inp, OUTp).astype(proj_dtype)                  # (inp, OUTp)
    b3 = pad2(params["b3"], 1, OUTp).astype(jnp.float32)                       # (1, OUTp)
    weights = (w1, b1, w2x, w2in, b2, w3x, w3in, b3)

    def nbytes(a):
        return int(a.size) * a.dtype.itemsize

    resident_w_bytes = sum(nbytes(a) for a in weights)
    stream = (resident_w_bytes > vmem_phys // 3) if force_stream is None else bool(force_stream)

    # ---- specs / kernel for the chosen variant --------------------------------
    def _buf_spec(shape, index_map, single_buffer):
        if single_buffer:
            # Grid-invariant blocks: one buffer is enough (they are DMA'd once).
            return pl.BlockSpec(shape, index_map, pipeline_mode=pl.Buffered(1))
        return pl.BlockSpec(shape, index_map)

    if stream:
        kernel = _make_streamed_kernel(inp, Hp, OUTp, act_fn, cdt, inp_on_vpu)
        grid = (n_btiles, num_layers)
        x_spec = pl.BlockSpec((block_b, inp), lambda i, l: (i, 0))
        out_spec = pl.BlockSpec((block_b, OUTp), lambda i, l: (i, 0))
        scratch = [pltpu.VMEM((block_b, Hp), jnp.float32)]     # persistent h
        dim_sem = ("parallel", "arbitrary")

        def weight_specs(single_buffer):
            def full(a):
                return _buf_spec(a.shape, lambda i, l, _n=a.ndim: (0,) * _n, single_buffer)
            # Per-layer tiles keep default double-buffering so the next layer's
            # DMA hides behind the current layer's matmul.
            w2x_s = pl.BlockSpec((1, Hp, Hp), lambda i, l: (l, 0, 0))
            w2in_s = pl.BlockSpec((1, inp, Hp), lambda i, l: (l, 0, 0))
            b2_s = pl.BlockSpec((1, 1, Hp), lambda i, l: (l, 0, 0))
            return [full(w1), full(b1), w2x_s, w2in_s, b2_s,
                    full(w3x), full(w3in), full(b3)]
    else:
        kernel = _make_resident_kernel(num_layers, inp, Hp, OUTp, act_fn, cdt, inp_on_vpu)
        grid = (n_btiles,)
        x_spec = pl.BlockSpec((block_b, inp), lambda i: (i, 0))
        out_spec = pl.BlockSpec((block_b, OUTp), lambda i: (i, 0))
        scratch = []
        dim_sem = ("parallel",)

        def weight_specs(single_buffer):
            def full(a):
                return _buf_spec(a.shape, lambda i, _n=a.ndim: (0,) * _n, single_buffer)
            return [full(a) for a in weights]

    # ---- advisory cost estimate -----------------------------------------------
    flops = 2 * Bp * (inp * Hp
                      + num_layers * (Hp * Hp + inp * Hp)
                      + Hp * OUTp + inp * OUTp)
    is_relu = isinstance(activation, str) and activation == "relu"
    transcendentals = 0 if is_relu else 2 * Bp * Hp * (num_layers + 1)
    bytes_accessed = nbytes(x_p) + resident_w_bytes + Bp * OUTp * 4
    cost = pl.CostEstimate(flops=int(flops), transcendentals=int(transcendentals),
                           bytes_accessed=int(bytes_accessed))

    # ---- VMEM budget + call ----------------------------------------------------
    def _run(single_buffer_weights):
        wfactor = 1 if single_buffer_weights else 2
        if stream:
            resident_small = sum(nbytes(a) for a in (w1, b1, w3x, w3in, b3))
            per_layer = (nbytes(w2x) + nbytes(w2in) + nbytes(b2)) // num_layers
            w_need = wfactor * resident_small + 2 * per_layer + block_b * Hp * 4
        else:
            w_need = wfactor * resident_w_bytes
        io_need = 2 * block_b * inp * 4 + 2 * block_b * OUTp * 4
        tmp_need = (4 + (inp if (inp_on_vpu and not stream) else 0)) * block_b * Hp * 4
        vmem_need = w_need + io_need + tmp_need
        vmem_limit = int(min(max(int(vmem_need * 1.5), 8 << 20), int(vmem_phys * 0.7)))

        return pl.pallas_call(
            kernel,
            out_shape=jax.ShapeDtypeStruct((Bp, OUTp), jnp.float32),
            grid_spec=pltpu.PrefetchScalarGridSpec(
                num_scalar_prefetch=0,
                grid=grid,
                in_specs=[x_spec] + weight_specs(single_buffer_weights),
                out_specs=out_spec,
                scratch_shapes=scratch,
            ),
            compiler_params=pltpu.CompilerParams(
                dimension_semantics=dim_sem,
                vmem_limit_bytes=vmem_limit,
            ),
            cost_estimate=cost,
        )(x_p, *weights)

    try:
        out_padded = _run(True)
    except Exception:
        # pl.Buffered(1) single-buffered weights not supported on this Pallas
        # version / config -> fall back to default double-buffered weights.
        out_padded = _run(False)

    return out_padded[:B, :out_dim]


# --------------------------------------------------------------------------
# Parameter init (PyTorch nn.Linear default init) + pure-JAX reference.
# --------------------------------------------------------------------------
def init_icnn_params(key, inp, out, num_hidden_units, num_layers):
    """PyTorch-style uniform(+/- 1/sqrt(fan_in)) init; weights pre-transposed to
    (in_features, out_features); concat-layers split into hidden/input parts."""

    def linear_init(key, fan_in, fan_out):
        kw, kb = jax.random.split(key)
        bound = 1.0 / jnp.sqrt(fan_in)
        w = jax.random.uniform(kw, (fan_out, fan_in), jnp.float32, -bound, bound)
        b = jax.random.uniform(kb, (fan_out,), jnp.float32, -bound, bound)
        return w, b

    keys = jax.random.split(key, num_layers + 2)
    params = {}
    w1, b1 = linear_init(keys[0], inp, num_hidden_units)
    params["w1"] = w1.T                       # (inp, H)
    params["b1"] = b1.reshape(1, -1)          # (1, H)

    params["w2x"], params["w2in"], params["b2"] = [], [], []
    for l in range(num_layers):
        w2, b2 = linear_init(keys[1 + l], num_hidden_units + inp, num_hidden_units)
        params["w2x"].append(w2[:, :num_hidden_units].T)   # (H, H)
        params["w2in"].append(w2[:, num_hidden_units:].T)  # (inp, H)
        params["b2"].append(b2.reshape(1, -1))             # (1, H)

    w3, b3 = linear_init(keys[-1], num_hidden_units + inp, out)
    params["w3x"] = w3[:, :num_hidden_units].T   # (H, out)
    params["w3in"] = w3[:, num_hidden_units:].T  # (inp, out)
    params["b3"] = b3.reshape(1, -1)             # (1, out)
    return params


def icnn_forward_ref(x, params, *, activation="relu"):
    """Pure-JAX reference matching the PyTorch forward exactly."""
    act = activation if callable(activation) else _ACTIVATIONS[activation]
    h = act(x @ params["w1"] + params["b1"])
    for w2x, w2in, b2 in zip(params["w2x"], params["w2in"], params["b2"]):
        h = act(h @ w2x + x @ w2in + b2)   # == Linear(cat([h, x], 1))
    return h @ params["w3x"] + x @ params["w3in"] + params["b3"]


# (loss_func / optimizer / scheduler / saveModel / recover_model from the
#  PyTorch module are training & I/O utilities, not part of the forward pass.)

if __name__ == "__main__":
    # Small, forward-consistent shapes.
    batch = 8
    inp = 4
    out = 2
    num_hidden_units = 32
    num_layers = 2

    key = jax.random.PRNGKey(0)
    k_x, k_p = jax.random.split(key)
    x = jax.random.normal(k_x, (batch, inp), dtype=jnp.float32)
    params = init_icnn_params(k_p, inp, out, num_hidden_units, num_layers)

    y_ref = icnn_forward_ref(x, params, activation="relu")

    # f32 MXU path, ReLU (tight tolerance).
    y = jax.block_until_ready(
        icnn_forward_pallas(x, params, activation="relu", compute_dtype=jnp.float32))
    assert y.shape == (batch, out)
    assert jnp.allclose(y, y_ref, atol=1e-4, rtol=1e-4), "relu f32 mismatch"

    # f32 path, softplus (exercises the configurable activation).
    y_sp = jax.block_until_ready(
        icnn_forward_pallas(x, params, activation="softplus", compute_dtype=jnp.float32))
    y_sp_ref = icnn_forward_ref(x, params, activation="softplus")
    assert jnp.allclose(y_sp, y_sp_ref, atol=1e-4, rtol=1e-4), "softplus mismatch"

    # Default bf16 MXU path (f32 accumulate/bias/activation), loose tolerance.
    y_bf = jax.block_until_ready(icnn_forward_pallas(x, params, activation="relu"))
    assert jnp.allclose(y_bf, y_ref, atol=1e-1, rtol=1e-1), "bf16 mismatch"

    # Streamed-w2x deep-L path (forced at small shapes for coverage).
    y_st = jax.block_until_ready(
        icnn_forward_pallas(x, params, activation="relu",
                            compute_dtype=jnp.float32, force_stream=True))
    assert jnp.allclose(y_st, y_ref, atol=1e-4, rtol=1e-4), "streamed mismatch"

    print("KERNEL_OK")
</pallas_src>

<mosaic_0001>
module attributes {stable_mosaic.version = 11 : i64} {
  func.func @kernel(%arg0: i32, %arg1: memref<8x4xf32, #tpu.memory_space<vmem>>, %arg2: memref<4x128xf32, #tpu.memory_space<vmem>>, %arg3: memref<1x128xf32, #tpu.memory_space<vmem>>, %arg4: memref<2x128x128xf32, #tpu.memory_space<vmem>>, %arg5: memref<2x4x128xf32, #tpu.memory_space<vmem>>, %arg6: memref<2x1x128xf32, #tpu.memory_space<vmem>>, %arg7: memref<128x128xf32, #tpu.memory_space<vmem>>, %arg8: memref<4x128xf32, #tpu.memory_space<vmem>>, %arg9: memref<1x128xf32, #tpu.memory_space<vmem>>, %arg10: memref<8x128xf32, #tpu.memory_space<vmem>>) attributes {dimension_semantics = [#tpu.dimension_semantics<parallel>], iteration_bounds = array<i64: 1>, scalar_prefetch = 0 : i64, scratch_operands = 0 : i64, tpu.core_type = #tpu.core_type<tc>, window_params = [{transform_indices = @transform_0, window_bounds = array<i64: 8, 4>}, {pipeline_mode = #tpu.pipeline_mode<synchronous>, transform_indices = @transform_1, window_bounds = array<i64: 4, 128>}, {pipeline_mode = #tpu.pipeline_mode<synchronous>, transform_indices = @transform_2, window_bounds = array<i64: 1, 128>}, {pipeline_mode = #tpu.pipeline_mode<synchronous>, transform_indices = @transform_3, window_bounds = array<i64: 2, 128, 128>}, {pipeline_mode = #tpu.pipeline_mode<synchronous>, transform_indices = @transform_4, window_bounds = array<i64: 2, 4, 128>}, {pipeline_mode = #tpu.pipeline_mode<synchronous>, transform_indices = @transform_5, window_bounds = array<i64: 2, 1, 128>}, {pipeline_mode = #tpu.pipeline_mode<synchronous>, transform_indices = @transform_6, window_bounds = array<i64: 128, 128>}, {pipeline_mode = #tpu.pipeline_mode<synchronous>, transform_indices = @transform_7, window_bounds = array<i64: 4, 128>}, {pipeline_mode = #tpu.pipeline_mode<synchronous>, transform_indices = @transform_8, window_bounds = array<i64: 1, 128>}, {transform_indices = @transform_9, window_bounds = array<i64: 8, 128>}]} {
    %c0 = arith.constant 0 : index
    %c0_0 = arith.constant 0 : index
    %0 = vector.load %arg1[%c0, %c0_0] : memref<8x4xf32, #tpu.memory_space<vmem>>, vector<8x4xf32>
    %1 = vector.extract_strided_slice %0 {offsets = [0, 0], sizes = [8, 1], strides = [1, 1]} : vector<8x4xf32> to vector<8x1xf32>
    %2 = vector.shape_cast %1 : vector<8x1xf32> to vector<8x1xf32>
    %3 = vector.broadcast %2 : vector<8x1xf32> to vector<8x128xf32>
    %4 = vector.extract_strided_slice %0 {offsets = [0, 1], sizes = [8, 1], strides = [1, 1]} : vector<8x4xf32> to vector<8x1xf32>
    %5 = vector.shape_cast %4 : vector<8x1xf32> to vector<8x1xf32>
    %6 = vector.broadcast %5 : vector<8x1xf32> to vector<8x128xf32>
    %7 = vector.extract_strided_slice %0 {offsets = [0, 2], sizes = [8, 1], strides = [1, 1]} : vector<8x4xf32> to vector<8x1xf32>
    %8 = vector.shape_cast %7 : vector<8x1xf32> to vector<8x1xf32>
    %9 = vector.broadcast %8 : vector<8x1xf32> to vector<8x128xf32>
    %10 = vector.extract_strided_slice %0 {offsets = [0, 3], sizes = [8, 1], strides = [1, 1]} : vector<8x4xf32> to vector<8x1xf32>
    %11 = vector.shape_cast %10 : vector<8x1xf32> to vector<8x1xf32>
    %12 = vector.broadcast %11 : vector<8x1xf32> to vector<8x128xf32>
    %c0_1 = arith.constant 0 : index
    %c0_2 = arith.constant 0 : index
    %13 = vector.load %arg2[%c0_1, %c0_2] : memref<4x128xf32, #tpu.memory_space<vmem>>, vector<4x128xf32>
    %c0_3 = arith.constant 0 : index
    %c0_4 = arith.constant 0 : index
    %14 = vector.load %arg3[%c0_3, %c0_4] : memref<1x128xf32, #tpu.memory_space<vmem>>, vector<1x128xf32>
    %15 = vector.shape_cast %14 : vector<1x128xf32> to vector<1x128xf32>
    %16 = vector.broadcast %15 : vector<1x128xf32> to vector<8x128xf32>
    %17 = vector.extract_strided_slice %13 {offsets = [0, 0], sizes = [1, 128], strides = [1, 1]} : vector<4x128xf32> to vector<1x128xf32>
    %18 = vector.shape_cast %17 : vector<1x128xf32> to vector<128xf32>
    %19 = vector.shape_cast %18 : vector<128xf32> to vector<1x128xf32>
    %20 = vector.broadcast %19 : vector<1x128xf32> to vector<8x128xf32>
    %21 = arith.mulf %3, %20 : vector<8x128xf32>
    %22 = arith.addf %16, %21 : vector<8x128xf32>
    %23 = vector.extract_strided_slice %13 {offsets = [1, 0], sizes = [1, 128], strides = [1, 1]} : vector<4x128xf32> to vector<1x128xf32>
    %24 = vector.shape_cast %23 : vector<1x128xf32> to vector<128xf32>
    %25 = vector.shape_cast %24 : vector<128xf32> to vector<1x128xf32>
    %26 = vector.broadcast %25 : vector<1x128xf32> to vector<8x128xf32>
    %27 = arith.mulf %6, %26 : vector<8x128xf32>
    %28 = arith.addf %22, %27 : vector<8x128xf32>
    %29 = vector.extract_strided_slice %13 {offsets = [2, 0], sizes = [1, 128], strides = [1, 1]} : vector<4x128xf32> to vector<1x128xf32>
    %30 = vector.shape_cast %29 : vector<1x128xf32> to vector<128xf32>
    %31 = vector.shape_cast %30 : vector<128xf32> to vector<1x128xf32>
    %32 = vector.broadcast %31 : vector<1x128xf32> to vector<8x128xf32>
    %33 = arith.mulf %9, %32 : vector<8x128xf32>
    %34 = arith.addf %28, %33 : vector<8x128xf32>
    %35 = vector.extract_strided_slice %13 {offsets = [3, 0], sizes = [1, 128], strides = [1, 1]} : vector<4x128xf32> to vector<1x128xf32>
    %36 = vector.shape_cast %35 : vector<1x128xf32> to vector<128xf32>
    %37 = vector.shape_cast %36 : vector<128xf32> to vector<1x128xf32>
    %38 = vector.broadcast %37 : vector<1x128xf32> to vector<8x128xf32>
    %39 = arith.mulf %12, %38 : vector<8x128xf32>
    %40 = arith.addf %34, %39 : vector<8x128xf32>
    %cst = arith.constant 0.000000e+00 : f32
    %41 = vector.broadcast %cst : f32 to vector<8x128xf32>
    %42 = arith.maximumf %40, %41 : vector<8x128xf32>
    %c0_5 = arith.constant 0 : index
    %c0_6 = arith.constant 0 : index
    %c0_7 = arith.constant 0 : index
    %43 = vector.load %arg4[%c0_5, %c0_6, %c0_7] : memref<2x128x128xf32, #tpu.memory_space<vmem>>, vector<1x128x128xf32>
    %44 = vector.shape_cast %43 : vector<1x128x128xf32> to vector<128x128xf32>
    %cst_8 = arith.constant dense<0.000000e+00> : vector<8x128xf32>
    %45 = tpu.matmul %42, %44, %cst_8 {dimension_numbers = #tpu.dot_dimension_numbers<[1], [0], [0], [1], [0, 0, 1, 1], [], []>} : vector<8x128xf32>, vector<128x128xf32>, vector<8x128xf32> -> vector<8x128xf32>
    %c0_9 = arith.constant 0 : index
    %c0_10 = arith.constant 0 : index
    %c0_11 = arith.constant 0 : index
    %46 = vector.load %arg5[%c0_9, %c0_10, %c0_11] : memref<2x4x128xf32, #tpu.memory_space<vmem>>, vector<1x4x128xf32>
    %47 = vector.shape_cast %46 : vector<1x4x128xf32> to vector<4x128xf32>
    %c0_12 = arith.constant 0 : index
    %c0_13 = arith.constant 0 : index
    %c0_14 = arith.constant 0 : index
    %48 = vector.load %arg6[%c0_12, %c0_13, %c0_14] : memref<2x1x128xf32, #tpu.memory_space<vmem>>, vector<1x1x128xf32>
    %49 = vector.shape_cast %48 : vector<1x1x128xf32> to vector<1x128xf32>
    %50 = vector.shape_cast %49 : vector<1x128xf32> to vector<1x128xf32>
    %51 = vector.broadcast %50 : vector<1x128xf32> to vector<8x128xf32>
    %52 = vector.extract_strided_slice %47 {offsets = [0, 0], sizes = [1, 128], strides = [1, 1]} : vector<4x128xf32> to vector<1x128xf32>
    %53 = vector.shape_cast %52 : vector<1x128xf32> to vector<128xf32>
    %54 = vector.shape_cast %53 : vector<128xf32> to vector<1x128xf32>
    %55 = vector.broadcast %54 : vector<1x128xf32> to vector<8x128xf32>
    %56 = arith.mulf %3, %55 : vector<8x128xf32>
    %57 = arith.addf %51, %56 : vector<8x128xf32>
    %58 = vector.extract_strided_slice %47 {offsets = [1, 0], sizes = [1, 128], strides = [1, 1]} : vector<4x128xf32> to vector<1x128xf32>
    %59 = vector.shape_cast %58 : vector<1x128xf32> to vector<128xf32>
    %60 = vector.shape_cast %59 : vector<128xf32> to vector<1x128xf32>
    %61 = vector.broadcast %60 : vector<1x128xf32> to vector<8x128xf32>
    %62 = arith.mulf %6, %61 : vector<8x128xf32>
    %63 = arith.addf %57, %62 : vector<8x128xf32>
    %64 = vector.extract_strided_slice %47 {offsets = [2, 0], sizes = [1, 128], strides = [1, 1]} : vector<4x128xf32> to vector<1x128xf32>
    %65 = vector.shape_cast %64 : vector<1x128xf32> to vector<128xf32>
    %66 = vector.shape_cast %65 : vector<128xf32> to vector<1x128xf32>
    %67 = vector.broadcast %66 : vector<1x128xf32> to vector<8x128xf32>
    %68 = arith.mulf %9, %67 : vector<8x128xf32>
    %69 = arith.addf %63, %68 : vector<8x128xf32>
    %70 = vector.extract_strided_slice %47 {offsets = [3, 0], sizes = [1, 128], strides = [1, 1]} : vector<4x128xf32> to vector<1x128xf32>
    %71 = vector.shape_cast %70 : vector<1x128xf32> to vector<128xf32>
    %72 = vector.shape_cast %71 : vector<128xf32> to vector<1x128xf32>
    %73 = vector.broadcast %72 : vector<1x128xf32> to vector<8x128xf32>
    %74 = arith.mulf %12, %73 : vector<8x128xf32>
    %75 = arith.addf %69, %74 : vector<8x128xf32>
    %76 = arith.addf %45, %75 : vector<8x128xf32>
    %cst_15 = arith.constant 0.000000e+00 : f32
    %77 = vector.broadcast %cst_15 : f32 to vector<8x128xf32>
    %78 = arith.maximumf %76, %77 : vector<8x128xf32>
    %c1 = arith.constant 1 : index
    %c0_16 = arith.constant 0 : index
    %c0_17 = arith.constant 0 : index
    %79 = vector.load %arg4[%c1, %c0_16, %c0_17] : memref<2x128x128xf32, #tpu.memory_space<vmem>>, vector<1x128x128xf32>
    %80 = vector.shape_cast %79 : vector<1x128x128xf32> to vector<128x128xf32>
    %cst_18 = arith.constant dense<0.000000e+00> : vector<8x128xf32>
    %81 = tpu.matmul %78, %80, %cst_18 {dimension_numbers = #tpu.dot_dimension_numbers<[1], [0], [0], [1], [0, 0, 1, 1], [], []>} : vector<8x128xf32>, vector<128x128xf32>, vector<8x128xf32> -> vector<8x128xf32>
    %c1_19 = arith.constant 1 : index
    %c0_20 = arith.constant 0 : index
    %c0_21 = arith.constant 0 : index
    %82 = vector.load %arg5[%c1_19, %c0_20, %c0_21] : memref<2x4x128xf32, #tpu.memory_space<vmem>>, vector<1x4x128xf32>
    %83 = vector.shape_cast %82 : vector<1x4x128xf32> to vector<4x128xf32>
    %c1_22 = arith.constant 1 : index
    %c0_23 = arith.constant 0 : index
    %c0_24 = arith.constant 0 : index
    %84 = vector.load %arg6[%c1_22, %c0_23, %c0_24] : memref<2x1x128xf32, #tpu.memory_space<vmem>>, vector<1x1x128xf32>
    %85 = vector.shape_cast %84 : vector<1x1x128xf32> to vector<1x128xf32>
    %86 = vector.shape_cast %85 : vector<1x128xf32> to vector<1x128xf32>
    %87 = vector.broadcast %86 : vector<1x128xf32> to vector<8x128xf32>
    %88 = vector.extract_strided_slice %83 {offsets = [0, 0], sizes = [1, 128], strides = [1, 1]} : vector<4x128xf32> to vector<1x128xf32>
    %89 = vector.shape_cast %88 : vector<1x128xf32> to vector<128xf32>
    %90 = vector.shape_cast %89 : vector<128xf32> to vector<1x128xf32>
    %91 = vector.broadcast %90 : vector<1x128xf32> to vector<8x128xf32>
    %92 = arith.mulf %3, %91 : vector<8x128xf32>
    %93 = arith.addf %87, %92 : vector<8x128xf32>
    %94 = vector.extract_strided_slice %83 {offsets = [1, 0], sizes = [1, 128], strides = [1, 1]} : vector<4x128xf32> to vector<1x128xf32>
    %95 = vector.shape_cast %94 : vector<1x128xf32> to vector<128xf32>
    %96 = vector.shape_cast %95 : vector<128xf32> to vector<1x128xf32>
    %97 = vector.broadcast %96 : vector<1x128xf32> to vector<8x128xf32>
    %98 = arith.mulf %6, %97 : vector<8x128xf32>
    %99 = arith.addf %93, %98 : vector<8x128xf32>
    %100 = vector.extract_strided_slice %83 {offsets = [2, 0], sizes = [1, 128], strides = [1, 1]} : vector<4x128xf32> to vector<1x128xf32>
    %101 = vector.shape_cast %100 : vector<1x128xf32> to vector<128xf32>
    %102 = vector.shape_cast %101 : vector<128xf32> to vector<1x128xf32>
    %103 = vector.broadcast %102 : vector<1x128xf32> to vector<8x128xf32>
    %104 = arith.mulf %9, %103 : vector<8x128xf32>
    %105 = arith.addf %99, %104 : vector<8x128xf32>
    %106 = vector.extract_strided_slice %83 {offsets = [3, 0], sizes = [1, 128], strides = [1, 1]} : vector<4x128xf32> to vector<1x128xf32>
    %107 = vector.shape_cast %106 : vector<1x128xf32> to vector<128xf32>
    %108 = vector.shape_cast %107 : vector<128xf32> to vector<1x128xf32>
    %109 = vector.broadcast %108 : vector<1x128xf32> to vector<8x128xf32>
    %110 = arith.mulf %12, %109 : vector<8x128xf32>
    %111 = arith.addf %105, %110 : vector<8x128xf32>
    %112 = arith.addf %81, %111 : vector<8x128xf32>
    %cst_25 = arith.constant 0.000000e+00 : f32
    %113 = vector.broadcast %cst_25 : f32 to vector<8x128xf32>
    %114 = arith.maximumf %112, %113 : vector<8x128xf32>
    %c0_26 = arith.constant 0 : index
    %c0_27 = arith.constant 0 : index
    %115 = vector.load %arg7[%c0_26, %c0_27] : memref<128x128xf32, #tpu.memory_space<vmem>>, vector<128x128xf32>
    %cst_28 = arith.constant dense<0.000000e+00> : vector<8x128xf32>
    %116 = tpu.matmul %114, %115, %cst_28 {dimension_numbers = #tpu.dot_dimension_numbers<[1], [0], [0], [1], [0, 0, 1, 1], [], []>} : vector<8x128xf32>, vector<128x128xf32>, vector<8x128xf32> -> vector<8x128xf32>
    %c0_29 = arith.constant 0 : index
    %c0_30 = arith.constant 0 : index
    %117 = vector.load %arg8[%c0_29, %c0_30] : memref<4x128xf32, #tpu.memory_space<vmem>>, vector<4x128xf32>
    %c0_31 = arith.constant 0 : index
    %c0_32 = arith.constant 0 : index
    %118 = vector.load %arg9[%c0_31, %c0_32] : memref<1x128xf32, #tpu.memory_space<vmem>>, vector<1x128xf32>
    %119 = vector.shape_cast %118 : vector<1x128xf32> to vector<1x128xf32>
    %120 = vector.broadcast %119 : vector<1x128xf32> to vector<8x128xf32>
    %121 = vector.extract_strided_slice %0 {offsets = [0, 0], sizes = [8, 1], strides = [1, 1]} : vector<8x4xf32> to vector<8x1xf32>
    %122 = vector.shape_cast %121 : vector<8x1xf32> to vector<8x1xf32>
    %123 = vector.broadcast %122 : vector<8x1xf32> to vector<8x128xf32>
    %124 = vector.extract_strided_slice %117 {offsets = [0, 0], sizes = [1, 128], strides = [1, 1]} : vector<4x128xf32> to vector<1x128xf32>
    %125 = vector.shape_cast %124 : vector<1x128xf32> to vector<128xf32>
    %126 = vector.shape_cast %125 : vector<128xf32> to vector<1x128xf32>
    %127 = vector.broadcast %126 : vector<1x128xf32> to vector<8x128xf32>
    %128 = arith.mulf %123, %127 : vector<8x128xf32>
    %129 = arith.addf %120, %128 : vector<8x128xf32>
    %130 = vector.extract_strided_slice %0 {offsets = [0, 1], sizes = [8, 1], strides = [1, 1]} : vector<8x4xf32> to vector<8x1xf32>
    %131 = vector.shape_cast %130 : vector<8x1xf32> to vector<8x1xf32>
    %132 = vector.broadcast %131 : vector<8x1xf32> to vector<8x128xf32>
    %133 = vector.extract_strided_slice %117 {offsets = [1, 0], sizes = [1, 128], strides = [1, 1]} : vector<4x128xf32> to vector<1x128xf32>
    %134 = vector.shape_cast %133 : vector<1x128xf32> to vector<128xf32>
    %135 = vector.shape_cast %134 : vector<128xf32> to vector<1x128xf32>
    %136 = vector.broadcast %135 : vector<1x128xf32> to vector<8x128xf32>
    %137 = arith.mulf %132, %136 : vector<8x128xf32>
    %138 = arith.addf %129, %137 : vector<8x128xf32>
    %139 = vector.extract_strided_slice %0 {offsets = [0, 2], sizes = [8, 1], strides = [1, 1]} : vector<8x4xf32> to vector<8x1xf32>
    %140 = vector.shape_cast %139 : vector<8x1xf32> to vector<8x1xf32>
    %141 = vector.broadcast %140 : vector<8x1xf32> to vector<8x128xf32>
    %142 = vector.extract_strided_slice %117 {offsets = [2, 0], sizes = [1, 128], strides = [1, 1]} : vector<4x128xf32> to vector<1x128xf32>
    %143 = vector.shape_cast %142 : vector<1x128xf32> to vector<128xf32>
    %144 = vector.shape_cast %143 : vector<128xf32> to vector<1x128xf32>
    %145 = vector.broadcast %144 : vector<1x128xf32> to vector<8x128xf32>
    %146 = arith.mulf %141, %145 : vector<8x128xf32>
    %147 = arith.addf %138, %146 : vector<8x128xf32>
    %148 = vector.extract_strided_slice %0 {offsets = [0, 3], sizes = [8, 1], strides = [1, 1]} : vector<8x4xf32> to vector<8x1xf32>
    %149 = vector.shape_cast %148 : vector<8x1xf32> to vector<8x1xf32>
    %150 = vector.broadcast %149 : vector<8x1xf32> to vector<8x128xf32>
    %151 = vector.extract_strided_slice %117 {offsets = [3, 0], sizes = [1, 128], strides = [1, 1]} : vector<4x128xf32> to vector<1x128xf32>
    %152 = vector.shape_cast %151 : vector<1x128xf32> to vector<128xf32>
    %153 = vector.shape_cast %152 : vector<128xf32> to vector<1x128xf32>
    %154 = vector.broadcast %153 : vector<1x128xf32> to vector<8x128xf32>
    %155 = arith.mulf %150, %154 : vector<8x128xf32>
    %156 = arith.addf %147, %155 : vector<8x128xf32>
    %157 = arith.addf %116, %156 : vector<8x128xf32>
    %c0_33 = arith.constant 0 : index
    %c0_34 = arith.constant 0 : index
    %158 = vector.load %arg10[%c0_33, %c0_34] : memref<8x128xf32, #tpu.memory_space<vmem>>, vector<8x128xf32>
    tpu.vector_store %arg10[%c0_33, %c0_34], %157 {strides = array<i32>} : memref<8x128xf32, #tpu.memory_space<vmem>>, vector<8x128xf32>,
    return
  }
  func.func @transform_0(%arg0: i32) -> (i32, i32) {
    %c0_i32 = arith.constant 0 : i32
    %c0_i32_0 = arith.constant 0 : i32
    return %arg0, %c0_i32 : i32, i32
  }
  func.func @transform_1(%arg0: i32) -> (i32, i32) {
    %c0_i32 = arith.constant 0 : i32
    %c0_i32_0 = arith.constant 0 : i32
    %c0_i32_1 = arith.constant 0 : i32
    return %c0_i32, %c0_i32_0 : i32, i32
  }
  func.func @transform_2(%arg0: i32) -> (i32, i32) {
    %c0_i32 = arith.constant 0 : i32
    %c0_i32_0 = arith.constant 0 : i32
    %c0_i32_1 = arith.constant 0 : i32
    return %c0_i32, %c0_i32_0 : i32, i32
  }
  func.func @transform_3(%arg0: i32) -> (i32, i32, i32) {
    %c0_i32 = arith.constant 0 : i32
    %c0_i32_0 = arith.constant 0 : i32
    %c0_i32_1 = arith.constant 0 : i32
    %c0_i32_2 = arith.constant 0 : i32
    return %c0_i32, %c0_i32_0, %c0_i32_1 : i32, i32, i32
  }
  func.func @transform_4(%arg0: i32) -> (i32, i32, i32) {
    %c0_i32 = arith.constant 0 : i32
    %c0_i32_0 = arith.constant 0 : i32
    %c0_i32_1 = arith.constant 0 : i32
    %c0_i32_2 = arith.constant 0 : i32
    return %c0_i32, %c0_i32_0, %c0_i32_1 : i32, i32, i32
  }
  func.func @transform_5(%arg0: i32) -> (i32, i32, i32) {
    %c0_i32 = arith.constant 0 : i32
    %c0_i32_0 = arith.constant 0 : i32
    %c0_i32_1 = arith.constant 0 : i32
    %c0_i32_2 = arith.constant 0 : i32
    return %c0_i32, %c0_i32_0, %c0_i32_1 : i32, i32, i32
  }
  func.func @transform_6(%arg0: i32) -> (i32, i32) {
    %c0_i32 = arith.constant 0 : i32
    %c0_i32_0 = arith.constant 0 : i32
    %c0_i32_1 = arith.constant 0 : i32
    return %c0_i32, %c0_i32_0 : i32, i32
  }
  func.func @transform_7(%arg0: i32) -> (i32, i32) {
    %c0_i32 = arith.constant 0 : i32
    %c0_i32_0 = arith.constant 0 : i32
    %c0_i32_1 = arith.constant 0 : i32
    return %c0_i32, %c0_i32_0 : i32, i32
  }
  func.func @transform_8(%arg0: i32) -> (i32, i32) {
    %c0_i32 = arith.constant 0 : i32
    %c0_i32_0 = arith.constant 0 : i32
    %c0_i32_1 = arith.constant 0 : i32
    return %c0_i32, %c0_i32_0 : i32, i32
  }
  func.func @transform_9(%arg0: i32) -> (i32, i32) {
    %c0_i32 = arith.constant 0 : i32
    %c0_i32_0 = arith.constant 0 : i32
    return %arg0, %c0_i32 : i32, i32
  }
}

module attributes {stable_mosaic.version = 11 : i64} {
  func.func @kernel(%arg0: i32, %arg1: memref<8x4xf32, #tpu.memory_space<vmem>>, %arg2: memref<4x128xf32, #tpu.memory_space<vmem>>, %arg3: memref<1x128xf32, #tpu.memory_space<vmem>>, %arg4: memref<2x128x128xf32, #tpu.memory_space<vmem>>, %arg5: memref<2x4x128xf32, #tpu.memory_space<vmem>>, %arg6: memref<2x1x128xf32, #tpu.memory_space<vmem>>, %arg7: memref<128x128xf32, #tpu.memory_space<vmem>>, %arg8: memref<4x128xf32, #tpu.memory_space<vmem>>, %arg9: memref<1x128xf32, #tpu.memory_space<vmem>>, %arg10: memref<8x128xf32, #tpu.memory_space<vmem>>) attributes {dimension_semantics = [#tpu.dimension_semantics<parallel>], iteration_bounds = array<i64: 1>, scalar_prefetch = 0 : i64, scratch_operands = 0 : i64, tpu.core_type = #tpu.core_type<tc>, window_params = [{transform_indices = @transform_0, window_bounds = array<i64: 8, 4>}, {pipeline_mode = #tpu.pipeline_mode<synchronous>, transform_indices = @transform_1, window_bounds = array<i64: 4, 128>}, {pipeline_mode = #tpu.pipeline_mode<synchronous>, transform_indices = @transform_2, window_bounds = array<i64: 1, 128>}, {pipeline_mode = #tpu.pipeline_mode<synchronous>, transform_indices = @transform_3, window_bounds = array<i64: 2, 128, 128>}, {pipeline_mode = #tpu.pipeline_mode<synchronous>, transform_indices = @transform_4, window_bounds = array<i64: 2, 4, 128>}, {pipeline_mode = #tpu.pipeline_mode<synchronous>, transform_indices = @transform_5, window_bounds = array<i64: 2, 1, 128>}, {pipeline_mode = #tpu.pipeline_mode<synchronous>, transform_indices = @transform_6, window_bounds = array<i64: 128, 128>}, {pipeline_mode = #tpu.pipeline_mode<synchronous>, transform_indices = @transform_7, window_bounds = array<i64: 4, 128>}, {pipeline_mode = #tpu.pipeline_mode<synchronous>, transform_indices = @transform_8, window_bounds = array<i64: 1, 128>}, {transform_indices = @transform_9, window_bounds = array<i64: 8, 128>}]} {
    %c0 = arith.constant 0 : index
    %c0_0 = arith.constant 0 : index
    %0 = vector.load %arg1[%c0, %c0_0] : memref<8x4xf32, #tpu.memory_space<vmem>>, vector<8x4xf32>
    %1 = vector.extract_strided_slice %0 {offsets = [0, 0], sizes = [8, 1], strides = [1, 1]} : vector<8x4xf32> to vector<8x1xf32>
    %2 = vector.shape_cast %1 : vector<8x1xf32> to vector<8x1xf32>
    %3 = vector.broadcast %2 : vector<8x1xf32> to vector<8x128xf32>
    %4 = vector.extract_strided_slice %0 {offsets = [0, 1], sizes = [8, 1], strides = [1, 1]} : vector<8x4xf32> to vector<8x1xf32>
    %5 = vector.shape_cast %4 : vector<8x1xf32> to vector<8x1xf32>
    %6 = vector.broadcast %5 : vector<8x1xf32> to vector<8x128xf32>
    %7 = vector.extract_strided_slice %0 {offsets = [0, 2], sizes = [8, 1], strides = [1, 1]} : vector<8x4xf32> to vector<8x1xf32>
    %8 = vector.shape_cast %7 : vector<8x1xf32> to vector<8x1xf32>
    %9 = vector.broadcast %8 : vector<8x1xf32> to vector<8x128xf32>
    %10 = vector.extract_strided_slice %0 {offsets = [0, 3], sizes = [8, 1], strides = [1, 1]} : vector<8x4xf32> to vector<8x1xf32>
    %11 = vector.shape_cast %10 : vector<8x1xf32> to vector<8x1xf32>
    %12 = vector.broadcast %11 : vector<8x1xf32> to vector<8x128xf32>
    %c0_1 = arith.constant 0 : index
    %c0_2 = arith.constant 0 : index
    %13 = vector.load %arg2[%c0_1, %c0_2] : memref<4x128xf32, #tpu.memory_space<vmem>>, vector<4x128xf32>
    %c0_3 = arith.constant 0 : index
    %c0_4 = arith.constant 0 : index
    %14 = vector.load %arg3[%c0_3, %c0_4] : memref<1x128xf32, #tpu.memory_space<vmem>>, vector<1x128xf32>
    %15 = vector.shape_cast %14 : vector<1x128xf32> to vector<1x128xf32>
    %16 = vector.broadcast %15 : vector<1x128xf32> to vector<8x128xf32>
    %17 = vector.extract_strided_slice %13 {offsets = [0, 0], sizes = [1, 128], strides = [1, 1]} : vector<4x128xf32> to vector<1x128xf32>
    %18 = vector.shape_cast %17 : vector<1x128xf32> to vector<128xf32>
    %19 = vector.shape_cast %18 : vector<128xf32> to vector<1x128xf32>
    %20 = vector.broadcast %19 : vector<1x128xf32> to vector<8x128xf32>
    %21 = arith.mulf %3, %20 : vector<8x128xf32>
    %22 = arith.addf %16, %21 : vector<8x128xf32>
    %23 = vector.extract_strided_slice %13 {offsets = [1, 0], sizes = [1, 128], strides = [1, 1]} : vector<4x128xf32> to vector<1x128xf32>
    %24 = vector.shape_cast %23 : vector<1x128xf32> to vector<128xf32>
    %25 = vector.shape_cast %24 : vector<128xf32> to vector<1x128xf32>
    %26 = vector.broadcast %25 : vector<1x128xf32> to vector<8x128xf32>
    %27 = arith.mulf %6, %26 : vector<8x128xf32>
    %28 = arith.addf %22, %27 : vector<8x128xf32>
    %29 = vector.extract_strided_slice %13 {offsets = [2, 0], sizes = [1, 128], strides = [1, 1]} : vector<4x128xf32> to vector<1x128xf32>
    %30 = vector.shape_cast %29 : vector<1x128xf32> to vector<128xf32>
    %31 = vector.shape_cast %30 : vector<128xf32> to vector<1x128xf32>
    %32 = vector.broadcast %31 : vector<1x128xf32> to vector<8x128xf32>
    %33 = arith.mulf %9, %32 : vector<8x128xf32>
    %34 = arith.addf %28, %33 : vector<8x128xf32>
    %35 = vector.extract_strided_slice %13 {offsets = [3, 0], sizes = [1, 128], strides = [1, 1]} : vector<4x128xf32> to vector<1x128xf32>
    %36 = vector.shape_cast %35 : vector<1x128xf32> to vector<128xf32>
    %37 = vector.shape_cast %36 : vector<128xf32> to vector<1x128xf32>
    %38 = vector.broadcast %37 : vector<1x128xf32> to vector<8x128xf32>
    %39 = arith.mulf %12, %38 : vector<8x128xf32>
    %40 = arith.addf %34, %39 : vector<8x128xf32>
    %cst = arith.constant 0.000000e+00 : f32
    %41 = vector.broadcast %cst : f32 to vector<8x128xf32>
    %42 = arith.maximumf %40, %41 : vector<8x128xf32>
    %c0_5 = arith.constant 0 : index
    %c0_6 = arith.constant 0 : index
    %c0_7 = arith.constant 0 : index
    %43 = vector.load %arg4[%c0_5, %c0_6, %c0_7] : memref<2x128x128xf32, #tpu.memory_space<vmem>>, vector<1x128x128xf32>
    %44 = vector.shape_cast %43 : vector<1x128x128xf32> to vector<128x128xf32>
    %cst_8 = arith.constant dense<0.000000e+00> : vector<8x128xf32>
    %45 = tpu.matmul %42, %44, %cst_8 {dimension_numbers = #tpu.dot_dimension_numbers<[1], [0], [0], [1], [0, 0, 1, 1], [], []>} : vector<8x128xf32>, vector<128x128xf32>, vector<8x128xf32> -> vector<8x128xf32>
    %c0_9 = arith.constant 0 : index
    %c0_10 = arith.constant 0 : index
    %c0_11 = arith.constant 0 : index
    %46 = vector.load %arg5[%c0_9, %c0_10, %c0_11] : memref<2x4x128xf32, #tpu.memory_space<vmem>>, vector<1x4x128xf32>
    %47 = vector.shape_cast %46 : vector<1x4x128xf32> to vector<4x128xf32>
    %c0_12 = arith.constant 0 : index
    %c0_13 = arith.constant 0 : index
    %c0_14 = arith.constant 0 : index
    %48 = vector.load %arg6[%c0_12, %c0_13, %c0_14] : memref<2x1x128xf32, #tpu.memory_space<vmem>>, vector<1x1x128xf32>
    %49 = vector.shape_cast %48 : vector<1x1x128xf32> to vector<1x128xf32>
    %50 = vector.shape_cast %49 : vector<1x128xf32> to vector<1x128xf32>
    %51 = vector.broadcast %50 : vector<1x128xf32> to vector<8x128xf32>
    %52 = vector.extract_strided_slice %47 {offsets = [0, 0], sizes = [1, 128], strides = [1, 1]} : vector<4x128xf32> to vector<1x128xf32>
    %53 = vector.shape_cast %52 : vector<1x128xf32> to vector<128xf32>
    %54 = vector.shape_cast %53 : vector<128xf32> to vector<1x128xf32>
    %55 = vector.broadcast %54 : vector<1x128xf32> to vector<8x128xf32>
    %56 = arith.mulf %3, %55 : vector<8x128xf32>
    %57 = arith.addf %51, %56 : vector<8x128xf32>
    %58 = vector.extract_strided_slice %47 {offsets = [1, 0], sizes = [1, 128], strides = [1, 1]} : vector<4x128xf32> to vector<1x128xf32>
    %59 = vector.shape_cast %58 : vector<1x128xf32> to vector<128xf32>
    %60 = vector.shape_cast %59 : vector<128xf32> to vector<1x128xf32>
    %61 = vector.broadcast %60 : vector<1x128xf32> to vector<8x128xf32>
    %62 = arith.mulf %6, %61 : vector<8x128xf32>
    %63 = arith.addf %57, %62 : vector<8x128xf32>
    %64 = vector.extract_strided_slice %47 {offsets = [2, 0], sizes = [1, 128], strides = [1, 1]} : vector<4x128xf32> to vector<1x128xf32>
    %65 = vector.shape_cast %64 : vector<1x128xf32> to vector<128xf32>
    %66 = vector.shape_cast %65 : vector<128xf32> to vector<1x128xf32>
    %67 = vector.broadcast %66 : vector<1x128xf32> to vector<8x128xf32>
    %68 = arith.mulf %9, %67 : vector<8x128xf32>
    %69 = arith.addf %63, %68 : vector<8x128xf32>
    %70 = vector.extract_strided_slice %47 {offsets = [3, 0], sizes = [1, 128], strides = [1, 1]} : vector<4x128xf32> to vector<1x128xf32>
    %71 = vector.shape_cast %70 : vector<1x128xf32> to vector<128xf32>
    %72 = vector.shape_cast %71 : vector<128xf32> to vector<1x128xf32>
    %73 = vector.broadcast %72 : vector<1x128xf32> to vector<8x128xf32>
    %74 = arith.mulf %12, %73 : vector<8x128xf32>
    %75 = arith.addf %69, %74 : vector<8x128xf32>
    %76 = arith.addf %45, %75 : vector<8x128xf32>
    %cst_15 = arith.constant 0.000000e+00 : f32
    %77 = vector.broadcast %cst_15 : f32 to vector<8x128xf32>
    %78 = arith.maximumf %76, %77 : vector<8x128xf32>
    %c1 = arith.constant 1 : index
    %c0_16 = arith.constant 0 : index
    %c0_17 = arith.constant 0 : index
    %79 = vector.load %arg4[%c1, %c0_16, %c0_17] : memref<2x128x128xf32, #tpu.memory_space<vmem>>, vector<1x128x128xf32>
    %80 = vector.shape_cast %79 : vector<1x128x128xf32> to vector<128x128xf32>
    %cst_18 = arith.constant dense<0.000000e+00> : vector<8x128xf32>
    %81 = tpu.matmul %78, %80, %cst_18 {dimension_numbers = #tpu.dot_dimension_numbers<[1], [0], [0], [1], [0, 0, 1, 1], [], []>} : vector<8x128xf32>, vector<128x128xf32>, vector<8x128xf32> -> vector<8x128xf32>
    %c1_19 = arith.constant 1 : index
    %c0_20 = arith.constant 0 : index
    %c0_21 = arith.constant 0 : index
    %82 = vector.load %arg5[%c1_19, %c0_20, %c0_21] : memref<2x4x128xf32, #tpu.memory_space<vmem>>, vector<1x4x128xf32>
    %83 = vector.shape_cast %82 : vector<1x4x128xf32> to vector<4x128xf32>
    %c1_22 = arith.constant 1 : index
    %c0_23 = arith.constant 0 : index
    %c0_24 = arith.constant 0 : index
    %84 = vector.load %arg6[%c1_22, %c0_23, %c0_24] : memref<2x1x128xf32, #tpu.memory_space<vmem>>, vector<1x1x128xf32>
    %85 = vector.shape_cast %84 : vector<1x1x128xf32> to vector<1x128xf32>
    %86 = vector.shape_cast %85 : vector<1x128xf32> to vector<1x128xf32>
    %87 = vector.broadcast %86 : vector<1x128xf32> to vector<8x128xf32>
    %88 = vector.extract_strided_slice %83 {offsets = [0, 0], sizes = [1, 128], strides = [1, 1]} : vector<4x128xf32> to vector<1x128xf32>
    %89 = vector.shape_cast %88 : vector<1x128xf32> to vector<128xf32>
    %90 = vector.shape_cast %89 : vector<128xf32> to vector<1x128xf32>
    %91 = vector.broadcast %90 : vector<1x128xf32> to vector<8x128xf32>
    %92 = arith.mulf %3, %91 : vector<8x128xf32>
    %93 = arith.addf %87, %92 : vector<8x128xf32>
    %94 = vector.extract_strided_slice %83 {offsets = [1, 0], sizes = [1, 128], strides = [1, 1]} : vector<4x128xf32> to vector<1x128xf32>
    %95 = vector.shape_cast %94 : vector<1x128xf32> to vector<128xf32>
    %96 = vector.shape_cast %95 : vector<128xf32> to vector<1x128xf32>
    %97 = vector.broadcast %96 : vector<1x128xf32> to vector<8x128xf32>
    %98 = arith.mulf %6, %97 : vector<8x128xf32>
    %99 = arith.addf %93, %98 : vector<8x128xf32>
    %100 = vector.extract_strided_slice %83 {offsets = [2, 0], sizes = [1, 128], strides = [1, 1]} : vector<4x128xf32> to vector<1x128xf32>
    %101 = vector.shape_cast %100 : vector<1x128xf32> to vector<128xf32>
    %102 = vector.shape_cast %101 : vector<128xf32> to vector<1x128xf32>
    %103 = vector.broadcast %102 : vector<1x128xf32> to vector<8x128xf32>
    %104 = arith.mulf %9, %103 : vector<8x128xf32>
    %105 = arith.addf %99, %104 : vector<8x128xf32>
    %106 = vector.extract_strided_slice %83 {offsets = [3, 0], sizes = [1, 128], strides = [1, 1]} : vector<4x128xf32> to vector<1x128xf32>
    %107 = vector.shape_cast %106 : vector<1x128xf32> to vector<128xf32>
    %108 = vector.shape_cast %107 : vector<128xf32> to vector<1x128xf32>
    %109 = vector.broadcast %108 : vector<1x128xf32> to vector<8x128xf32>
    %110 = arith.mulf %12, %109 : vector<8x128xf32>
    %111 = arith.addf %105, %110 : vector<8x128xf32>
    %112 = arith.addf %81, %111 : vector<8x128xf32>
    %cst_25 = arith.constant 0.000000e+00 : f32
    %113 = vector.broadcast %cst_25 : f32 to vector<8x128xf32>
    %114 = arith.maximumf %112, %113 : vector<8x128xf32>
    %c0_26 = arith.constant 0 : index
    %c0_27 = arith.constant 0 : index
    %115 = vector.load %arg7[%c0_26, %c0_27] : memref<128x128xf32, #tpu.memory_space<vmem>>, vector<128x128xf32>
    %cst_28 = arith.constant dense<0.000000e+00> : vector<8x128xf32>
    %116 = tpu.matmul %114, %115, %cst_28 {dimension_numbers = #tpu.dot_dimension_numbers<[1], [0], [0], [1], [0, 0, 1, 1], [], []>} : vector<8x128xf32>, vector<128x128xf32>, vector<8x128xf32> -> vector<8x128xf32>
    %c0_29 = arith.constant 0 : index
    %c0_30 = arith.constant 0 : index
    %117 = vector.load %arg8[%c0_29, %c0_30] : memref<4x128xf32, #tpu.memory_space<vmem>>, vector<4x128xf32>
    %c0_31 = arith.constant 0 : index
    %c0_32 = arith.constant 0 : index
    %118 = vector.load %arg9[%c0_31, %c0_32] : memref<1x128xf32, #tpu.memory_space<vmem>>, vector<1x128xf32>
    %119 = vector.shape_cast %118 : vector<1x128xf32> to vector<1x128xf32>
    %120 = vector.broadcast %119 : vector<1x128xf32> to vector<8x128xf32>
    %121 = vector.extract_strided_slice %0 {offsets = [0, 0], sizes = [8, 1], strides = [1, 1]} : vector<8x4xf32> to vector<8x1xf32>
    %122 = vector.shape_cast %121 : vector<8x1xf32> to vector<8x1xf32>
    %123 = vector.broadcast %122 : vector<8x1xf32> to vector<8x128xf32>
    %124 = vector.extract_strided_slice %117 {offsets = [0, 0], sizes = [1, 128], strides = [1, 1]} : vector<4x128xf32> to vector<1x128xf32>
    %125 = vector.shape_cast %124 : vector<1x128xf32> to vector<128xf32>
    %126 = vector.shape_cast %125 : vector<128xf32> to vector<1x128xf32>
    %127 = vector.broadcast %126 : vector<1x128xf32> to vector<8x128xf32>
    %128 = arith.mulf %123, %127 : vector<8x128xf32>
    %129 = arith.addf %120, %128 : vector<8x128xf32>
    %130 = vector.extract_strided_slice %0 {offsets = [0, 1], sizes = [8, 1], strides = [1, 1]} : vector<8x4xf32> to vector<8x1xf32>
    %131 = vector.shape_cast %130 : vector<8x1xf32> to vector<8x1xf32>
    %132 = vector.broadcast %131 : vector<8x1xf32> to vector<8x128xf32>
    %133 = vector.extract_strided_slice %117 {offsets = [1, 0], sizes = [1, 128], strides = [1, 1]} : vector<4x128xf32> to vector<1x128xf32>
    %134 = vector.shape_cast %133 : vector<1x128xf32> to vector<128xf32>
    %135 = vector.shape_cast %134 : vector<128xf32> to vector<1x128xf32>
    %136 = vector.broadcast %135 : vector<1x128xf32> to vector<8x128xf32>
    %137 = arith.mulf %132, %136 : vector<8x128xf32>
    %138 = arith.addf %129, %137 : vector<8x128xf32>
    %139 = vector.extract_strided_slice %0 {offsets = [0, 2], sizes = [8, 1], strides = [1, 1]} : vector<8x4xf32> to vector<8x1xf32>
    %140 = vector.shape_cast %139 : vector<8x1xf32> to vector<8x1xf32>
    %141 = vector.broadcast %140 : vector<8x1xf32> to vector<8x128xf32>
    %142 = vector.extract_strided_slice %117 {offsets = [2, 0], sizes = [1, 128], strides = [1, 1]} : vector<4x128xf32> to vector<1x128xf32>
    %143 = vector.shape_cast %142 : vector<1x128xf32> to vector<128xf32>
    %144 = vector.shape_cast %143 : vector<128xf32> to vector<1x128xf32>
    %145 = vector.broadcast %144 : vector<1x128xf32> to vector<8x128xf32>
    %146 = arith.mulf %141, %145 : vector<8x128xf32>
    %147 = arith.addf %138, %146 : vector<8x128xf32>
    %148 = vector.extract_strided_slice %0 {offsets = [0, 3], sizes = [8, 1], strides = [1, 1]} : vector<8x4xf32> to vector<8x1xf32>
    %149 = vector.shape_cast %148 : vector<8x1xf32> to vector<8x1xf32>
    %150 = vector.broadcast %149 : vector<8x1xf32> to vector<8x128xf32>
    %151 = vector.extract_strided_slice %117 {offsets = [3, 0], sizes = [1, 128], strides = [1, 1]} : vector<4x128xf32> to vector<1x128xf32>
    %152 = vector.shape_cast %151 : vector<1x128xf32> to vector<128xf32>
    %153 = vector.shape_cast %152 : vector<128xf32> to vector<1x128xf32>
    %154 = vector.broadcast %153 : vector<1x128xf32> to vector<8x128xf32>
    %155 = arith.mulf %150, %154 : vector<8x128xf32>
    %156 = arith.addf %147, %155 : vector<8x128xf32>
    %157 = arith.addf %116, %156 : vector<8x128xf32>
    %c0_33 = arith.constant 0 : index
    %c0_34 = arith.constant 0 : index
    %158 = vector.load %arg10[%c0_33, %c0_34] : memref<8x128xf32, #tpu.memory_space<vmem>>, vector<8x128xf32>
    tpu.vector_store %arg10[%c0_33, %c0_34], %157 {strides = array<i32>} : memref<8x128xf32, #tpu.memory_space<vmem>>, vector<8x128xf32>,
    return
  }
  func.func @transform_0(%arg0: i32) -> (i32, i32) {
    %c0_i32 = arith.constant 0 : i32
    %c0_i32_0 = arith.constant 0 : i32
    return %arg0, %c0_i32 : i32, i32
  }
  func.func @transform_1(%arg0: i32) -> (i32, i32) {
    %c0_i32 = arith.constant 0 : i32
    %c0_i32_0 = arith.constant 0 : i32
    %c0_i32_1 = arith.constant 0 : i32
    return %c0_i32, %c0_i32_0 : i32, i32
  }
  func.func @transform_2(%arg0: i32) -> (i32, i32) {
    %c0_i32 = arith.constant 0 : i32
    %c0_i32_0 = arith.constant 0 : i32
    %c0_i32_1 = arith.constant 0 : i32
    return %c0_i32, %c0_i32_0 : i32, i32
  }
  func.func @transform_3(%arg0: i32) -> (i32, i32, i32) {
    %c0_i32 = arith.constant 0 : i32
    %c0_i32_0 = arith.constant 0 : i32
    %c0_i32_1 = arith.constant 0 : i32
    %c0_i32_2 = arith.constant 0 : i32
    return %c0_i32, %c0_i32_0, %c0_i32_1 : i32, i32, i32
  }
  func.func @transform_4(%arg0: i32) -> (i32, i32, i32) {
    %c0_i32 = arith.constant 0 : i32
    %c0_i32_0 = arith.constant 0 : i32
    %c0_i32_1 = arith.constant 0 : i32
    %c0_i32_2 = arith.constant 0 : i32
    return %c0_i32, %c0_i32_0, %c0_i32_1 : i32, i32, i32
  }
  func.func @transform_5(%arg0: i32) -> (i32, i32, i32) {
    %c0_i32 = arith.constant 0 : i32
    %c0_i32_0 = arith.constant 0 : i32
    %c0_i32_1 = arith.constant 0 : i32
    %c0_i32_2 = arith.constant 0 : i32
    return %c0_i32, %c0_i32_0, %c0_i32_1 : i32, i32, i32
  }
  func.func @transform_6(%arg0: i32) -> (i32, i32) {
    %c0_i32 = arith.constant 0 : i32
    %c0_i32_0 = arith.constant 0 : i32
    %c0_i32_1 = arith.constant 0 : i32
    return %c0_i32, %c0_i32_0 : i32, i32
  }
  func.func @transform_7(%arg0: i32) -> (i32, i32) {
    %c0_i32 = arith.constant 0 : i32
    %c0_i32_0 = arith.constant 0 : i32
    %c0_i32_1 = arith.constant 0 : i32
    return %c0_i32, %c0_i32_0 : i32, i32
  }
  func.func @transform_8(%arg0: i32) -> (i32, i32) {
    %c0_i32 = arith.constant 0 : i32
    %c0_i32_0 = arith.constant 0 : i32
    %c0_i32_1 = arith.constant 0 : i32
    return %c0_i32, %c0_i32_0 : i32, i32
  }
  func.func @transform_9(%arg0: i32) -> (i32, i32) {
    %c0_i32 = arith.constant 0 : i32
    %c0_i32_0 = arith.constant 0 : i32
    return %arg0, %c0_i32 : i32, i32
  }
}

</mosaic_0001>

<llo_original>
// kernel: tpu_custom_call.1
$region0: #{tpu_custom_call.1}
  #allocation0 [shape = 'u32[]', space=smem, size = 0x4, offset = 0x4, fixed_abs, tag = 'smem constant byte address 0x4 - core index']
  #allocation1 [shape = 'u32[72,128]{1,0:T(1,128)}', space=vmem, size = 0x9000, scoped, tag = 'internal scratch']
  %s0 = inlined_call_operand.vmem [shape: f32[8,4], index: 0, kind: input, shape index: {}]
  %s1 = inlined_call_operand.vmem [shape: f32[4,128], index: 1, kind: input, shape index: {}]
  %s2 = inlined_call_operand.hbm [shape: f32[1,128], index: 2, kind: input, shape index: {}]
  %s3 = inlined_call_operand.hbm [shape: f32[2,128,128], index: 3, kind: input, shape index: {}]
  %s4 = inlined_call_operand.vmem [shape: f32[2,4,128], index: 4, kind: input, shape index: {}]
  %s5 = inlined_call_operand.hbm [shape: f32[2,1,128], index: 5, kind: input, shape index: {}]
  %s6 = inlined_call_operand.hbm [shape: f32[128,128], index: 6, kind: input, shape index: {}]
  %s7 = inlined_call_operand.vmem [shape: f32[4,128], index: 7, kind: input, shape index: {}]
  %s8 = inlined_call_operand.vmem [shape: f32[1,128], index: 8, kind: input, shape index: {}]
  %s9 = inlined_call_operand.hbm [shape: f32[8,128], index: 9, kind: output, shape index: {}]
  %s10 = sld [smem:[#allocation0]]
  $region62: #{tpu_custom_call.1} parent=0
    _
  %s12 = ssub.s32 1, %s10
  %s13 = scalar_select 0, %s12, %s10
  $region1: #{tpu_custom_call.1} parent=0
    #allocation2 [shape = 'u8[512]{0}', space=vmem, size = 0x400, scoped, tag = 'input window, operand 2, single buffered']
    #allocation3 [shape = 's32[1]{0}', space=sflag, size = 0x4, scoped, tag = 'scoped memory for tpu_custom_call.1']
    #allocation4 [shape = 's32[1]{0}', space=sflag, size = 0x4, scoped, tag = 'scoped memory for tpu_custom_call.1']
    #allocation5 [shape = 'u8[131072]{0}', space=vmem, size = 0x20000, scoped, tag = 'input window, operand 3, single buffered']
    #allocation6 [shape = 's32[1]{0}', space=sflag, size = 0x4, scoped, tag = 'scoped memory for tpu_custom_call.1']
    #allocation7 [shape = 'u8[1024]{0}', space=vmem, size = 0x400, scoped, tag = 'input window, operand 5, single buffered']
    #allocation8 [shape = 'u8[65536]{0}', space=vmem, size = 0x10000, scoped, tag = 'input window, operand 6, single buffered']
    #allocation9 [shape = 's32[1]{0}', space=sflag, size = 0x4, scoped, tag = 'scoped memory for tpu_custom_call.1']
    #allocation10 [shape = 'u8[4096]{0}', space=vmem, size = 0x1000, scoped, tag = 'output window, operand 0, single buffered']
    %14 = vsyncpa [#allocation3], 0
    %15 = vsyncpa [#allocation6], 0
    %16 = vsyncpa [#allocation9], 0
    %17 = vsyncpa [#allocation4], 0
    // Predicated region
    $region2: #{tpu_custom_call.1} parent=1 // pred_check
      _
    $region3: #{tpu_custom_call.1} parent=1 // pred_check_branch
      %19 = sbr.rel (0) target = $region5
    $region4: #{tpu_custom_call.1} parent=1 // pred_region
      _
    $region5: #{tpu_custom_call.1} parent=1 // pred_fallthru
      _
    // Predicated region
    $region6: #{tpu_custom_call.1} parent=1 // pred_check
      _
    $region7: #{tpu_custom_call.1} parent=1 // pred_check_branch
      %21 = sbr.rel (0) target = $region9
    $region8: #{tpu_custom_call.1} parent=1 // pred_region
      _
    $region9: #{tpu_custom_call.1} parent=1 // pred_fallthru
      _
    // Predicated region
    $region10: #{tpu_custom_call.1} parent=1 // pred_check
      _
    $region11: #{tpu_custom_call.1} parent=1 // pred_check_branch
      %23 = sbr.rel (0) target = $region13
    $region12: #{tpu_custom_call.1} parent=1 // pred_region
      %25 = vsyncadd [#allocation3], 0
      %s27 = sshll.u32 %s2, 4
      %s28 = int_to_ptr.hbm [resolvable:$true] %s27
      %s29 = sshll.u32 [#allocation2], 4
      %s30 = int_to_ptr.vmem [resolvable:$true] %s29
      %32 = dma.hbm_to_vmem [thread:$0]  %s28, 16, %s30, [#allocation3]
    $region13: #{tpu_custom_call.1} parent=1 // pred_fallthru
      _
    // Predicated region
    $region14: #{tpu_custom_call.1} parent=1 // pred_check
      _
    $region15: #{tpu_custom_call.1} parent=1 // pred_check_branch
      %34 = sbr.rel (0) target = $region17
    $region16: #{tpu_custom_call.1} parent=1 // pred_region
      %36 = vsyncadd [#allocation6], 0
      %s37 = sshll.u32 %s3, 4
      %s38 = int_to_ptr.hbm [resolvable:$true] %s37
      %s39 = sshll.u32 [#allocation5], 4
      %s40 = int_to_ptr.vmem [resolvable:$true] %s39
      %45 = dma.hbm_to_vmem [thread:$0]  %s38, 4096, %s40, [#allocation6], 128, 128, 8
    $region17: #{tpu_custom_call.1} parent=1 // pred_fallthru
      _
    // Predicated region
    $region18: #{tpu_custom_call.1} parent=1 // pred_check
      _
    $region19: #{tpu_custom_call.1} parent=1 // pred_check_branch
      %47 = sbr.rel (0) target = $region21
    $region20: #{tpu_custom_call.1} parent=1 // pred_region
      _
    $region21: #{tpu_custom_call.1} parent=1 // pred_fallthru
      _
    // Predicated region
    $region22: #{tpu_custom_call.1} parent=1 // pred_check
      _
    $region23: #{tpu_custom_call.1} parent=1 // pred_check_branch
      %49 = sbr.rel (0) target = $region25
    $region24: #{tpu_custom_call.1} parent=1 // pred_region
      %51 = vsyncadd [#allocation6], 0
      %s52 = sshll.u32 %s5, 4
      %s53 = int_to_ptr.hbm [resolvable:$true] %s52
      %s54 = sshll.u32 [#allocation7], 4
      %s55 = int_to_ptr.vmem [resolvable:$true] %s54
      %60 = dma.hbm_to_vmem [thread:$0]  %s53, 32, %s55, [#allocation6], 16, 16, 1
    $region25: #{tpu_custom_call.1} parent=1 // pred_fallthru
      _
    // Predicated region
    $region26: #{tpu_custom_call.1} parent=1 // pred_check
      _
    $region27: #{tpu_custom_call.1} parent=1 // pred_check_branch
      %62 = sbr.rel (0) target = $region29
    $region28: #{tpu_custom_call.1} parent=1 // pred_region
      %64 = vsyncadd [#allocation9], 0
      %s65 = sshll.u32 %s6, 4
      %s66 = int_to_ptr.hbm [resolvable:$true] %s65
      %s67 = sshll.u32 [#allocation8], 4
      %s68 = int_to_ptr.vmem [resolvable:$true] %s67
      %73 = dma.hbm_to_vmem [thread:$0]  %s66, 2048, %s68, [#allocation9], 128, 128, 8
    $region29: #{tpu_custom_call.1} parent=1 // pred_fallthru
      _
    // Predicated region
    $region30: #{tpu_custom_call.1} parent=1 // pred_check
      _
    $region31: #{tpu_custom_call.1} parent=1 // pred_check_branch
      %75 = sbr.rel (0) target = $region33
    $region32: #{tpu_custom_call.1} parent=1 // pred_region
      _
    $region33: #{tpu_custom_call.1} parent=1 // pred_fallthru
      _
    // Predicated region
    $region34: #{tpu_custom_call.1} parent=1 // pred_check
      _
    $region35: #{tpu_custom_call.1} parent=1 // pred_check_branch
      %77 = sbr.rel (0) target = $region37
    $region36: #{tpu_custom_call.1} parent=1 // pred_region
      _
    $region37: #{tpu_custom_call.1} parent=1 // pred_fallthru
      _
    // Predicated region
    $region38: #{tpu_custom_call.1} parent=1 // pred_check
      _
    $region39: #{tpu_custom_call.1} parent=1 // pred_check_branch
      %79 = sbr.rel (0) target = $region41
    $region40: #{tpu_custom_call.1} parent=1 // pred_region
      %81 = dma.done [#allocation3], 16
    $region41: #{tpu_custom_call.1} parent=1 // pred_fallthru
      _
    // Predicated region
    $region42: #{tpu_custom_call.1} parent=1 // pred_check
      _
    $region43: #{tpu_custom_call.1} parent=1 // pred_check_branch
      %83 = sbr.rel (0) target = $region45
    $region44: #{tpu_custom_call.1} parent=1 // pred_region
      %85 = dma.done [#allocation6], 4096
    $region45: #{tpu_custom_call.1} parent=1 // pred_fallthru
      _
    // Predicated region
    $region46: #{tpu_custom_call.1} parent=1 // pred_check
      _
    $region47: #{tpu_custom_call.1} parent=1 // pred_check_branch
      %87 = sbr.rel (0) target = $region49
    $region48: #{tpu_custom_call.1} parent=1 // pred_region
      %89 = dma.done [#allocation6], 32
    $region49: #{tpu_custom_call.1} parent=1 // pred_fallthru
      _
    // Predicated region
    $region50: #{tpu_custom_call.1} parent=1 // pred_check
      _
    $region51: #{tpu_custom_call.1} parent=1 // pred_check_branch
      %91 = sbr.rel (0) target = $region53
    $region52: #{tpu_custom_call.1} parent=1 // pred_region
      %93 = dma.done [#allocation9], 2048
    $region53: #{tpu_custom_call.1} parent=1 // pred_fallthru
      _
    %v94 = vld [vmem:[%s0] sm:$0xff]
    %96 = vset.pattern.permute.xlu0 0
    %97 = vperm.xlu0 %96, %v94
    %v98 = vpop.permute.xlu0 %97
    %100 = vset.pattern.permute.xlu0 1
    %101 = vperm.xlu0 %100, %v94
    %v102 = vpop.permute.xlu0 %101
    %104 = vset.pattern.permute.xlu0 2
    %105 = vperm.xlu0 %104, %v94
    %v106 = vpop.permute.xlu0 %105
    %108 = vset.pattern.permute.xlu0 3
    %109 = vperm.xlu0 %108, %v94
    %v110 = vpop.permute.xlu0 %109
    %v112 = vld [vmem:[%s1] sm:$0xf]
    %v113 = vld [vmem:[#allocation2] sm:$0x1]
    %v115 = vperm.slane %v113, 0
    %v117 = vperm.slane %v112, 0
    %v118 = vmul.f32 %v98, %v117
    %v119 = vadd.f32 %v115, %v118
    %v120 = vperm.slane %v112, 1
    %v121 = vmul.f32 %v102, %v120
    %v122 = vadd.f32 %v119, %v121
    %v123 = vperm.slane %v112, 2
    %v124 = vmul.f32 %v106, %v123
    %v125 = vadd.f32 %v122, %v124
    %v126 = vperm.slane %v112, 3
    %v127 = vmul.f32 %v110, %v126
    %v128 = vadd.f32 %v125, %v127
    %v129 = vmax.f32 %v128, 0.0
    %v130 = vld [vmem:[#allocation5] sm:$0xff]
    %v131 = vld [vmem:[#allocation5 + $0x8] sm:$0xff]
    %v132 = vld [vmem:[#allocation5 + $0x10] sm:$0xff]
    %v133 = vld [vmem:[#allocation5 + $0x18] sm:$0xff]
    %v134 = vld [vmem:[#allocation5 + $0x20] sm:$0xff]
    %v135 = vld [vmem:[#allocation5 + $0x28] sm:$0xff]
    %v136 = vld [vmem:[#allocation5 + $0x30] sm:$0xff]
    %v137 = vld [vmem:[#allocation5 + $0x38] sm:$0xff]
    %v138 = vld [vmem:[#allocation5 + $0x40] sm:$0xff]
    %v139 = vld [vmem:[#allocation5 + $0x48] sm:$0xff]
    %v140 = vld [vmem:[#allocation5 + $0x50] sm:$0xff]
    %v141 = vld [vmem:[#allocation5 + $0x58] sm:$0xff]
    %v142 = vld [vmem:[#allocation5 + $0x60] sm:$0xff]
    %v143 = vld [vmem:[#allocation5 + $0x68] sm:$0xff]
    %v144 = vld [vmem:[#allocation5 + $0x70] sm:$0xff]
    %v145 = vld [vmem:[#allocation5 + $0x78] sm:$0xff]
    %v146 = vld [vmem:[%s4] sm:$0xf]
    %v147 = vld [vmem:[#allocation7] sm:$0x1]
    %v149 = vperm.slane %v147, 0
    %v151 = vperm.slane %v146, 0
    %v152 = vmul.f32 %v98, %v151
    %v153 = vadd.f32 %v149, %v152
    %v154 = vperm.slane %v146, 1
    %v155 = vmul.f32 %v102, %v154
    %v156 = vadd.f32 %v153, %v155
    %v157 = vperm.slane %v146, 2
    %v158 = vmul.f32 %v106, %v157
    %v159 = vadd.f32 %v156, %v158
    %v160 = vperm.slane %v146, 3
    %v161 = vmul.f32 %v110, %v160
    %v162 = vadd.f32 %v159, %v161
    %163 = vmatpush.msra.mxu0 %v145
    %164 = vmatpush.msra.mxu0 %v144
    %165 = vmatpush.msra.mxu0 %v143
    %166 = vmatpush.msra.mxu0 %v142
    %167 = vmatpush.msra.mxu0 %v141
    %168 = vmatpush.msra.mxu0 %v140
    %169 = vmatpush.msra.mxu0 %v139
    %170 = vmatpush.msra.mxu0 %v138
    %171 = vmatpush.msra.mxu0 %v137
    %172 = vmatpush.msra.mxu0 %v136
    %173 = vmatpush.msra.mxu0 %v135
    %174 = vmatpush.msra.mxu0 %v134
    %175 = vmatpush.msra.mxu0 %v133
    %176 = vmatpush.msra.mxu0 %v132
    %177 = vmatpush.msra.mxu0 %v131
    %178 = vmatpush.msra.mxu0 %v130
    %179 = vmatmul.f32.gmra.mxu0 %v129
    %v180 = vpop.f32.mrf.mxu0
    %v181 = vadd.f32 %v162, %v180
    %182 = vdwg.mxu0
    %v183 = vmax.f32 %v181, 0.0
    %s184 = scalar_lea.vmem [#allocation5], 128
    %v185 = vld [vmem:[%s184] sm:$0xff]
    %v186 = vld [vmem:[%s184 + $0x8] sm:$0xff]
    %v187 = vld [vmem:[%s184 + $0x10] sm:$0xff]
    %v188 = vld [vmem:[%s184 + $0x18] sm:$0xff]
    %v189 = vld [vmem:[%s184 + $0x20] sm:$0xff]
    %v190 = vld [vmem:[%s184 + $0x28] sm:$0xff]
    %v191 = vld [vmem:[%s184 + $0x30] sm:$0xff]
    %v192 = vld [vmem:[%s184 + $0x38] sm:$0xff]
    %v193 = vld [vmem:[%s184 + $0x40] sm:$0xff]
    %v194 = vld [vmem:[%s184 + $0x48] sm:$0xff]
    %v195 = vld [vmem:[%s184 + $0x50] sm:$0xff]
    %v196 = vld [vmem:[%s184 + $0x58] sm:$0xff]
    %v197 = vld [vmem:[%s184 + $0x60] sm:$0xff]
    %v198 = vld [vmem:[%s184 + $0x68] sm:$0xff]
    %v199 = vld [vmem:[%s184 + $0x70] sm:$0xff]
    %v200 = vld [vmem:[%s184 + $0x78] sm:$0xff]
    %s201 = scalar_lea.vmem %s4, 4
    %v202 = vld [vmem:[%s201] sm:$0xf]
    %s203 = scalar_lea.vmem [#allocation7], 1
    %v204 = vld [vmem:[%s203] sm:$0x1]
    %v206 = vperm.slane %v204, 0
    %v208 = vperm.slane %v202, 0
    %v209 = vmul.f32 %v98, %v208
    %v210 = vadd.f32 %v206, %v209
    %v211 = vperm.slane %v202, 1
    %v212 = vmul.f32 %v102, %v211
    %v213 = vadd.f32 %v210, %v212
    %v214 = vperm.slane %v202, 2
    %v215 = vmul.f32 %v106, %v214
    %v216 = vadd.f32 %v213, %v215
    %v217 = vperm.slane %v202, 3
    %v218 = vmul.f32 %v110, %v217
    %v219 = vadd.f32 %v216, %v218
    %220 = vmatpush.msra.mxu0 %v200
    %221 = vmatpush.msra.mxu0 %v199
    %222 = vmatpush.msra.mxu0 %v198
    %223 = vmatpush.msra.mxu0 %v197
    %224 = vmatpush.msra.mxu0 %v196
    %225 = vmatpush.msra.mxu0 %v195
    %226 = vmatpush.msra.mxu0 %v194
    %227 = vmatpush.msra.mxu0 %v193
    %228 = vmatpush.msra.mxu0 %v192
    %229 = vmatpush.msra.mxu0 %v191
    %230 = vmatpush.msra.mxu0 %v190
    %231 = vmatpush.msra.mxu0 %v189
    %232 = vmatpush.msra.mxu0 %v188
    %233 = vmatpush.msra.mxu0 %v187
    %234 = vmatpush.msra.mxu0 %v186
    %235 = vmatpush.msra.mxu0 %v185
    %236 = vmatmul.f32.gmra.mxu0 %v183
    %v237 = vpop.f32.mrf.mxu0
    %v238 = vadd.f32 %v219, %v237
    %239 = vdwg.mxu0
    %v240 = vmax.f32 %v238, 0.0
    %v241 = vld [vmem:[#allocation8] sm:$0xff]
    %v242 = vld [vmem:[#allocation8 + $0x8] sm:$0xff]
    %v243 = vld [vmem:[#allocation8 + $0x10] sm:$0xff]
    %v244 = vld [vmem:[#allocation8 + $0x18] sm:$0xff]
    %v245 = vld [vmem:[#allocation8 + $0x20] sm:$0xff]
    %v246 = vld [vmem:[#allocation8 + $0x28] sm:$0xff]
    %v247 = vld [vmem:[#allocation8 + $0x30] sm:$0xff]
    %v248 = vld [vmem:[#allocation8 + $0x38] sm:$0xff]
    %v249 = vld [vmem:[#allocation8 + $0x40] sm:$0xff]
    %v250 = vld [vmem:[#allocation8 + $0x48] sm:$0xff]
    %v251 = vld [vmem:[#allocation8 + $0x50] sm:$0xff]
    %v252 = vld [vmem:[#allocation8 + $0x58] sm:$0xff]
    %v253 = vld [vmem:[#allocation8 + $0x60] sm:$0xff]
    %v254 = vld [vmem:[#allocation8 + $0x68] sm:$0xff]
    %v255 = vld [vmem:[#allocation8 + $0x70] sm:$0xff]
    %v256 = vld [vmem:[#allocation8 + $0x78] sm:$0xff]
    %v257 = vld [vmem:[%s7] sm:$0xf]
    %v258 = vld [vmem:[%s8] sm:$0x1]
    %v260 = vperm.slane %v258, 0
    %v262 = vperm.slane %v257, 0
    %v263 = vmul.f32 %v98, %v262
    %v264 = vadd.f32 %v260, %v263
    %v265 = vperm.slane %v257, 1
    %v266 = vmul.f32 %v102, %v265
    %v267 = vadd.f32 %v264, %v266
    %v268 = vperm.slane %v257, 2
    %v269 = vmul.f32 %v106, %v268
    %v270 = vadd.f32 %v267, %v269
    %v271 = vperm.slane %v257, 3
    %v272 = vmul.f32 %v110, %v271
    %v273 = vadd.f32 %v270, %v272
    %274 = vmatpush.msra.mxu0 %v256
    %275 = vmatpush.msra.mxu0 %v255
    %276 = vmatpush.msra.mxu0 %v254
    %277 = vmatpush.msra.mxu0 %v253
    %278 = vmatpush.msra.mxu0 %v252
    %279 = vmatpush.msra.mxu0 %v251
    %280 = vmatpush.msra.mxu0 %v250
    %281 = vmatpush.msra.mxu0 %v249
    %282 = vmatpush.msra.mxu0 %v248
    %283 = vmatpush.msra.mxu0 %v247
    %284 = vmatpush.msra.mxu0 %v246
    %285 = vmatpush.msra.mxu0 %v245
    %286 = vmatpush.msra.mxu0 %v244
    %287 = vmatpush.msra.mxu0 %v243
    %288 = vmatpush.msra.mxu0 %v242
    %289 = vmatpush.msra.mxu0 %v241
    %290 = vmatmul.f32.gmra.mxu0 %v240
    %v291 = vpop.f32.mrf.mxu0
    %v292 = vadd.f32 %v273, %v291
    %293 = vdwg.mxu0
    %294 = vst [vmem:[#allocation10] sm:$0xff] %v292
    // Predicated region
    $region54: #{tpu_custom_call.1} parent=1 // pred_check
      _
    $region55: #{tpu_custom_call.1} parent=1 // pred_check_branch
      %296 = sbr.rel (0) target = $region57
    $region56: #{tpu_custom_call.1} parent=1 // pred_region
      %298 = vsyncadd [#allocation4], 0
      %s300 = sshll.u32 [#allocation10], 4
      %s301 = int_to_ptr.vmem [resolvable:$true] %s300
      %s302 = sshll.u32 %s9, 4
      %s303 = int_to_ptr.hbm [resolvable:$true] %s302
      %305 = dma.vmem_to_hbm [thread:$0]  %s301, 128, %s303, [#allocation4]
    $region57: #{tpu_custom_call.1} parent=1 // pred_fallthru
      _
    // Predicated region
    $region58: #{tpu_custom_call.1} parent=1 // pred_check
      _
    $region59: #{tpu_custom_call.1} parent=1 // pred_check_branch
      %307 = sbr.rel (0) target = $region61
    $region60: #{tpu_custom_call.1} parent=1 // pred_region
      %309 = dma.done [#allocation4], 128
    $region61: #{tpu_custom_call.1} parent=1 // pred_fallthru
      _
    %310 = vsyncpa [#allocation3], 1
    %311 = vsyncpa [#allocation6], 1
    %312 = vsyncpa [#allocation9], 1
    %313 = vsyncpa [#allocation4], 1

// kernel: tpu_custom_call.1
$region0: #{tpu_custom_call.1}
  #allocation0 [shape = 'u32[]', space=smem, size = 0x4, offset = 0x4, fixed_abs, tag = 'smem constant byte address 0x4 - core index']
  #allocation1 [shape = 'u32[72,128]{1,0:T(1,128)}', space=vmem, size = 0x9000, scoped, tag = 'internal scratch']
  %s0 = inlined_call_operand.vmem [shape: f32[8,4], index: 0, kind: input, shape index: {}]
  %s1 = inlined_call_operand.vmem [shape: f32[4,128], index: 1, kind: input, shape index: {}]
  %s2 = inlined_call_operand.hbm [shape: f32[1,128], index: 2, kind: input, shape index: {}]
  %s3 = inlined_call_operand.hbm [shape: f32[2,128,128], index: 3, kind: input, shape index: {}]
  %s4 = inlined_call_operand.vmem [shape: f32[2,4,128], index: 4, kind: input, shape index: {}]
  %s5 = inlined_call_operand.hbm [shape: f32[2,1,128], index: 5, kind: input, shape index: {}]
  %s6 = inlined_call_operand.hbm [shape: f32[128,128], index: 6, kind: input, shape index: {}]
  %s7 = inlined_call_operand.vmem [shape: f32[4,128], index: 7, kind: input, shape index: {}]
  %s8 = inlined_call_operand.vmem [shape: f32[1,128], index: 8, kind: input, shape index: {}]
  %s9 = inlined_call_operand.hbm [shape: f32[8,128], index: 9, kind: output, shape index: {}]
  %s10 = sld [smem:[#allocation0]]
  $region62: #{tpu_custom_call.1} parent=0
    _
  %s12 = ssub.s32 1, %s10
  %s13 = scalar_select 0, %s12, %s10
  $region1: #{tpu_custom_call.1} parent=0
    #allocation2 [shape = 'u8[512]{0}', space=vmem, size = 0x400, scoped, tag = 'input window, operand 2, single buffered']
    #allocation3 [shape = 's32[1]{0}', space=sflag, size = 0x4, scoped, tag = 'scoped memory for tpu_custom_call.1']
    #allocation4 [shape = 's32[1]{0}', space=sflag, size = 0x4, scoped, tag = 'scoped memory for tpu_custom_call.1']
    #allocation5 [shape = 'u8[131072]{0}', space=vmem, size = 0x20000, scoped, tag = 'input window, operand 3, single buffered']
    #allocation6 [shape = 's32[1]{0}', space=sflag, size = 0x4, scoped, tag = 'scoped memory for tpu_custom_call.1']
    #allocation7 [shape = 'u8[1024]{0}', space=vmem, size = 0x400, scoped, tag = 'input window, operand 5, single buffered']
    #allocation8 [shape = 'u8[65536]{0}', space=vmem, size = 0x10000, scoped, tag = 'input window, operand 6, single buffered']
    #allocation9 [shape = 's32[1]{0}', space=sflag, size = 0x4, scoped, tag = 'scoped memory for tpu_custom_call.1']
    #allocation10 [shape = 'u8[4096]{0}', space=vmem, size = 0x1000, scoped, tag = 'output window, operand 0, single buffered']
    %14 = vsyncpa [#allocation3], 0
    %15 = vsyncpa [#allocation6], 0
    %16 = vsyncpa [#allocation9], 0
    %17 = vsyncpa [#allocation4], 0
    // Predicated region
    $region2: #{tpu_custom_call.1} parent=1 // pred_check
      _
    $region3: #{tpu_custom_call.1} parent=1 // pred_check_branch
      %19 = sbr.rel (0) target = $region5
    $region4: #{tpu_custom_call.1} parent=1 // pred_region
      _
    $region5: #{tpu_custom_call.1} parent=1 // pred_fallthru
      _
    // Predicated region
    $region6: #{tpu_custom_call.1} parent=1 // pred_check
      _
    $region7: #{tpu_custom_call.1} parent=1 // pred_check_branch
      %21 = sbr.rel (0) target = $region9
    $region8: #{tpu_custom_call.1} parent=1 // pred_region
      _
    $region9: #{tpu_custom_call.1} parent=1 // pred_fallthru
      _
    // Predicated region
    $region10: #{tpu_custom_call.1} parent=1 // pred_check
      _
    $region11: #{tpu_custom_call.1} parent=1 // pred_check_branch
      %23 = sbr.rel (0) target = $region13
    $region12: #{tpu_custom_call.1} parent=1 // pred_region
      %25 = vsyncadd [#allocation3], 0
      %s27 = sshll.u32 %s2, 4
      %s28 = int_to_ptr.hbm [resolvable:$true] %s27
      %s29 = sshll.u32 [#allocation2], 4
      %s30 = int_to_ptr.vmem [resolvable:$true] %s29
      %32 = dma.hbm_to_vmem [thread:$0]  %s28, 16, %s30, [#allocation3]
    $region13: #{tpu_custom_call.1} parent=1 // pred_fallthru
      _
    // Predicated region
    $region14: #{tpu_custom_call.1} parent=1 // pred_check
      _
    $region15: #{tpu_custom_call.1} parent=1 // pred_check_branch
      %34 = sbr.rel (0) target = $region17
    $region16: #{tpu_custom_call.1} parent=1 // pred_region
      %36 = vsyncadd [#allocation6], 0
      %s37 = sshll.u32 %s3, 4
      %s38 = int_to_ptr.hbm [resolvable:$true] %s37
      %s39 = sshll.u32 [#allocation5], 4
      %s40 = int_to_ptr.vmem [resolvable:$true] %s39
      %45 = dma.hbm_to_vmem [thread:$0]  %s38, 4096, %s40, [#allocation6], 128, 128, 8
    $region17: #{tpu_custom_call.1} parent=1 // pred_fallthru
      _
    // Predicated region
    $region18: #{tpu_custom_call.1} parent=1 // pred_check
      _
    $region19: #{tpu_custom_call.1} parent=1 // pred_check_branch
      %47 = sbr.rel (0) target = $region21
    $region20: #{tpu_custom_call.1} parent=1 // pred_region
      _
    $region21: #{tpu_custom_call.1} parent=1 // pred_fallthru
      _
    // Predicated region
    $region22: #{tpu_custom_call.1} parent=1 // pred_check
      _
    $region23: #{tpu_custom_call.1} parent=1 // pred_check_branch
      %49 = sbr.rel (0) target = $region25
    $region24: #{tpu_custom_call.1} parent=1 // pred_region
      %51 = vsyncadd [#allocation6], 0
      %s52 = sshll.u32 %s5, 4
      %s53 = int_to_ptr.hbm [resolvable:$true] %s52
      %s54 = sshll.u32 [#allocation7], 4
      %s55 = int_to_ptr.vmem [resolvable:$true] %s54
      %60 = dma.hbm_to_vmem [thread:$0]  %s53, 32, %s55, [#allocation6], 16, 16, 1
    $region25: #{tpu_custom_call.1} parent=1 // pred_fallthru
      _
    // Predicated region
    $region26: #{tpu_custom_call.1} parent=1 // pred_check
      _
    $region27: #{tpu_custom_call.1} parent=1 // pred_check_branch
      %62 = sbr.rel (0) target = $region29
    $region28: #{tpu_custom_call.1} parent=1 // pred_region
      %64 = vsyncadd [#allocation9], 0
      %s65 = sshll.u32 %s6, 4
      %s66 = int_to_ptr.hbm [resolvable:$true] %s65
      %s67 = sshll.u32 [#allocation8], 4
      %s68 = int_to_ptr.vmem [resolvable:$true] %s67
      %73 = dma.hbm_to_vmem [thread:$0]  %s66, 2048, %s68, [#allocation9], 128, 128, 8
    $region29: #{tpu_custom_call.1} parent=1 // pred_fallthru
      _
    // Predicated region
    $region30: #{tpu_custom_call.1} parent=1 // pred_check
      _
    $region31: #{tpu_custom_call.1} parent=1 // pred_check_branch
      %75 = sbr.rel (0) target = $region33
    $region32: #{tpu_custom_call.1} parent=1 // pred_region
      _
    $region33: #{tpu_custom_call.1} parent=1 // pred_fallthru
      _
    // Predicated region
    $region34: #{tpu_custom_call.1} parent=1 // pred_check
      _
    $region35: #{tpu_custom_call.1} parent=1 // pred_check_branch
      %77 = sbr.rel (0) target = $region37
    $region36: #{tpu_custom_call.1} parent=1 // pred_region
      _
    $region37: #{tpu_custom_call.1} parent=1 // pred_fallthru
      _
    // Predicated region
    $region38: #{tpu_custom_call.1} parent=1 // pred_check
      _
    $region39: #{tpu_custom_call.1} parent=1 // pred_check_branch
      %79 = sbr.rel (0) target = $region41
    $region40: #{tpu_custom_call.1} parent=1 // pred_region
      %81 = dma.done [#allocation3], 16
    $region41: #{tpu_custom_call.1} parent=1 // pred_fallthru
      _
    // Predicated region
    $region42: #{tpu_custom_call.1} parent=1 // pred_check
      _
    $region43: #{tpu_custom_call.1} parent=1 // pred_check_branch
      %83 = sbr.rel (0) target = $region45
    $region44: #{tpu_custom_call.1} parent=1 // pred_region
      %85 = dma.done [#allocation6], 4096
    $region45: #{tpu_custom_call.1} parent=1 // pred_fallthru
      _
    // Predicated region
    $region46: #{tpu_custom_call.1} parent=1 // pred_check
      _
    $region47: #{tpu_custom_call.1} parent=1 // pred_check_branch
      %87 = sbr.rel (0) target = $region49
    $region48: #{tpu_custom_call.1} parent=1 // pred_region
      %89 = dma.done [#allocation6], 32
    $region49: #{tpu_custom_call.1} parent=1 // pred_fallthru
      _
    // Predicated region
    $region50: #{tpu_custom_call.1} parent=1 // pred_check
      _
    $region51: #{tpu_custom_call.1} parent=1 // pred_check_branch
      %91 = sbr.rel (0) target = $region53
    $region52: #{tpu_custom_call.1} parent=1 // pred_region
      %93 = dma.done [#allocation9], 2048
    $region53: #{tpu_custom_call.1} parent=1 // pred_fallthru
      _
    %v94 = vld [vmem:[%s0] sm:$0xff]
    %96 = vset.pattern.permute.xlu0 0
    %97 = vperm.xlu0 %96, %v94
    %v98 = vpop.permute.xlu0 %97
    %100 = vset.pattern.permute.xlu0 1
    %101 = vperm.xlu0 %100, %v94
    %v102 = vpop.permute.xlu0 %101
    %104 = vset.pattern.permute.xlu0 2
    %105 = vperm.xlu0 %104, %v94
    %v106 = vpop.permute.xlu0 %105
    %108 = vset.pattern.permute.xlu0 3
    %109 = vperm.xlu0 %108, %v94
    %v110 = vpop.permute.xlu0 %109
    %v112 = vld [vmem:[%s1] sm:$0xf]
    %v113 = vld [vmem:[#allocation2] sm:$0x1]
    %v115 = vperm.slane %v113, 0
    %v117 = vperm.slane %v112, 0
    %v118 = vmul.f32 %v98, %v117
    %v119 = vadd.f32 %v115, %v118
    %v120 = vperm.slane %v112, 1
    %v121 = vmul.f32 %v102, %v120
    %v122 = vadd.f32 %v119, %v121
    %v123 = vperm.slane %v112, 2
    %v124 = vmul.f32 %v106, %v123
    %v125 = vadd.f32 %v122, %v124
    %v126 = vperm.slane %v112, 3
    %v127 = vmul.f32 %v110, %v126
    %v128 = vadd.f32 %v125, %v127
    %v129 = vmax.f32 %v128, 0.0
    %v130 = vld [vmem:[#allocation5] sm:$0xff]
    %v131 = vld [vmem:[#allocation5 + $0x8] sm:$0xff]
    %v132 = vld [vmem:[#allocation5 + $0x10] sm:$0xff]
    %v133 = vld [vmem:[#allocation5 + $0x18] sm:$0xff]
    %v134 = vld [vmem:[#allocation5 + $0x20] sm:$0xff]
    %v135 = vld [vmem:[#allocation5 + $0x28] sm:$0xff]
    %v136 = vld [vmem:[#allocation5 + $0x30] sm:$0xff]
    %v137 = vld [vmem:[#allocation5 + $0x38] sm:$0xff]
    %v138 = vld [vmem:[#allocation5 + $0x40] sm:$0xff]
    %v139 = vld [vmem:[#allocation5 + $0x48] sm:$0xff]
    %v140 = vld [vmem:[#allocation5 + $0x50] sm:$0xff]
    %v141 = vld [vmem:[#allocation5 + $0x58] sm:$0xff]
    %v142 = vld [vmem:[#allocation5 + $0x60] sm:$0xff]
    %v143 = vld [vmem:[#allocation5 + $0x68] sm:$0xff]
    %v144 = vld [vmem:[#allocation5 + $0x70] sm:$0xff]
    %v145 = vld [vmem:[#allocation5 + $0x78] sm:$0xff]
    %v146 = vld [vmem:[%s4] sm:$0xf]
    %v147 = vld [vmem:[#allocation7] sm:$0x1]
    %v149 = vperm.slane %v147, 0
    %v151 = vperm.slane %v146, 0
    %v152 = vmul.f32 %v98, %v151
    %v153 = vadd.f32 %v149, %v152
    %v154 = vperm.slane %v146, 1
    %v155 = vmul.f32 %v102, %v154
    %v156 = vadd.f32 %v153, %v155
    %v157 = vperm.slane %v146, 2
    %v158 = vmul.f32 %v106, %v157
    %v159 = vadd.f32 %v156, %v158
    %v160 = vperm.slane %v146, 3
    %v161 = vmul.f32 %v110, %v160
    %v162 = vadd.f32 %v159, %v161
    %163 = vmatpush.msra.mxu0 %v145
    %164 = vmatpush.msra.mxu0 %v144
    %165 = vmatpush.msra.mxu0 %v143
    %166 = vmatpush.msra.mxu0 %v142
    %167 = vmatpush.msra.mxu0 %v141
    %168 = vmatpush.msra.mxu0 %v140
    %169 = vmatpush.msra.mxu0 %v139
    %170 = vmatpush.msra.mxu0 %v138
    %171 = vmatpush.msra.mxu0 %v137
    %172 = vmatpush.msra.mxu0 %v136
    %173 = vmatpush.msra.mxu0 %v135
    %174 = vmatpush.msra.mxu0 %v134
    %175 = vmatpush.msra.mxu0 %v133
    %176 = vmatpush.msra.mxu0 %v132
    %177 = vmatpush.msra.mxu0 %v131
    %178 = vmatpush.msra.mxu0 %v130
    %179 = vmatmul.f32.gmra.mxu0 %v129
    %v180 = vpop.f32.mrf.mxu0
    %v181 = vadd.f32 %v162, %v180
    %182 = vdwg.mxu0
    %v183 = vmax.f32 %v181, 0.0
    %s184 = scalar_lea.vmem [#allocation5], 128
    %v185 = vld [vmem:[%s184] sm:$0xff]
    %v186 = vld [vmem:[%s184 + $0x8] sm:$0xff]
    %v187 = vld [vmem:[%s184 + $0x10] sm:$0xff]
    %v188 = vld [vmem:[%s184 + $0x18] sm:$0xff]
    %v189 = vld [vmem:[%s184 + $0x20] sm:$0xff]
    %v190 = vld [vmem:[%s184 + $0x28] sm:$0xff]
    %v191 = vld [vmem:[%s184 + $0x30] sm:$0xff]
    %v192 = vld [vmem:[%s184 + $0x38] sm:$0xff]
    %v193 = vld [vmem:[%s184 + $0x40] sm:$0xff]
    %v194 = vld [vmem:[%s184 + $0x48] sm:$0xff]
    %v195 = vld [vmem:[%s184 + $0x50] sm:$0xff]
    %v196 = vld [vmem:[%s184 + $0x58] sm:$0xff]
    %v197 = vld [vmem:[%s184 + $0x60] sm:$0xff]
    %v198 = vld [vmem:[%s184 + $0x68] sm:$0xff]
    %v199 = vld [vmem:[%s184 + $0x70] sm:$0xff]
    %v200 = vld [vmem:[%s184 + $0x78] sm:$0xff]
    %s201 = scalar_lea.vmem %s4, 4
    %v202 = vld [vmem:[%s201] sm:$0xf]
    %s203 = scalar_lea.vmem [#allocation7], 1
    %v204 = vld [vmem:[%s203] sm:$0x1]
    %v206 = vperm.slane %v204, 0
    %v208 = vperm.slane %v202, 0
    %v209 = vmul.f32 %v98, %v208
    %v210 = vadd.f32 %v206, %v209
    %v211 = vperm.slane %v202, 1
    %v212 = vmul.f32 %v102, %v211
    %v213 = vadd.f32 %v210, %v212
    %v214 = vperm.slane %v202, 2
    %v215 = vmul.f32 %v106, %v214
    %v216 = vadd.f32 %v213, %v215
    %v217 = vperm.slane %v202, 3
    %v218 = vmul.f32 %v110, %v217
    %v219 = vadd.f32 %v216, %v218
    %220 = vmatpush.msra.mxu0 %v200
    %221 = vmatpush.msra.mxu0 %v199
    %222 = vmatpush.msra.mxu0 %v198
    %223 = vmatpush.msra.mxu0 %v197
    %224 = vmatpush.msra.mxu0 %v196
    %225 = vmatpush.msra.mxu0 %v195
    %226 = vmatpush.msra.mxu0 %v194
    %227 = vmatpush.msra.mxu0 %v193
    %228 = vmatpush.msra.mxu0 %v192
    %229 = vmatpush.msra.mxu0 %v191
    %230 = vmatpush.msra.mxu0 %v190
    %231 = vmatpush.msra.mxu0 %v189
    %232 = vmatpush.msra.mxu0 %v188
    %233 = vmatpush.msra.mxu0 %v187
    %234 = vmatpush.msra.mxu0 %v186
    %235 = vmatpush.msra.mxu0 %v185
    %236 = vmatmul.f32.gmra.mxu0 %v183
    %v237 = vpop.f32.mrf.mxu0
    %v238 = vadd.f32 %v219, %v237
    %239 = vdwg.mxu0
    %v240 = vmax.f32 %v238, 0.0
    %v241 = vld [vmem:[#allocation8] sm:$0xff]
    %v242 = vld [vmem:[#allocation8 + $0x8] sm:$0xff]
    %v243 = vld [vmem:[#allocation8 + $0x10] sm:$0xff]
    %v244 = vld [vmem:[#allocation8 + $0x18] sm:$0xff]
    %v245 = vld [vmem:[#allocation8 + $0x20] sm:$0xff]
    %v246 = vld [vmem:[#allocation8 + $0x28] sm:$0xff]
    %v247 = vld [vmem:[#allocation8 + $0x30] sm:$0xff]
    %v248 = vld [vmem:[#allocation8 + $0x38] sm:$0xff]
    %v249 = vld [vmem:[#allocation8 + $0x40] sm:$0xff]
    %v250 = vld [vmem:[#allocation8 + $0x48] sm:$0xff]
    %v251 = vld [vmem:[#allocation8 + $0x50] sm:$0xff]
    %v252 = vld [vmem:[#allocation8 + $0x58] sm:$0xff]
    %v253 = vld [vmem:[#allocation8 + $0x60] sm:$0xff]
    %v254 = vld [vmem:[#allocation8 + $0x68] sm:$0xff]
    %v255 = vld [vmem:[#allocation8 + $0x70] sm:$0xff]
    %v256 = vld [vmem:[#allocation8 + $0x78] sm:$0xff]
    %v257 = vld [vmem:[%s7] sm:$0xf]
    %v258 = vld [vmem:[%s8] sm:$0x1]
    %v260 = vperm.slane %v258, 0
    %v262 = vperm.slane %v257, 0
    %v263 = vmul.f32 %v98, %v262
    %v264 = vadd.f32 %v260, %v263
    %v265 = vperm.slane %v257, 1
    %v266 = vmul.f32 %v102, %v265
    %v267 = vadd.f32 %v264, %v266
    %v268 = vperm.slane %v257, 2
    %v269 = vmul.f32 %v106, %v268
    %v270 = vadd.f32 %v267, %v269
    %v271 = vperm.slane %v257, 3
    %v272 = vmul.f32 %v110, %v271
    %v273 = vadd.f32 %v270, %v272
    %274 = vmatpush.msra.mxu0 %v256
    %275 = vmatpush.msra.mxu0 %v255
    %276 = vmatpush.msra.mxu0 %v254
    %277 = vmatpush.msra.mxu0 %v253
    %278 = vmatpush.msra.mxu0 %v252
    %279 = vmatpush.msra.mxu0 %v251
    %280 = vmatpush.msra.mxu0 %v250
    %281 = vmatpush.msra.mxu0 %v249
    %282 = vmatpush.msra.mxu0 %v248
    %283 = vmatpush.msra.mxu0 %v247
    %284 = vmatpush.msra.mxu0 %v246
    %285 = vmatpush.msra.mxu0 %v245
    %286 = vmatpush.msra.mxu0 %v244
    %287 = vmatpush.msra.mxu0 %v243
    %288 = vmatpush.msra.mxu0 %v242
    %289 = vmatpush.msra.mxu0 %v241
    %290 = vmatmul.f32.gmra.mxu0 %v240
    %v291 = vpop.f32.mrf.mxu0
    %v292 = vadd.f32 %v273, %v291
    %293 = vdwg.mxu0
    %294 = vst [vmem:[#allocation10] sm:$0xff] %v292
    // Predicated region
    $region54: #{tpu_custom_call.1} parent=1 // pred_check
      _
    $region55: #{tpu_custom_call.1} parent=1 // pred_check_branch
      %296 = sbr.rel (0) target = $region57
    $region56: #{tpu_custom_call.1} parent=1 // pred_region
      %298 = vsyncadd [#allocation4], 0
      %s300 = sshll.u32 [#allocation10], 4
      %s301 = int_to_ptr.vmem [resolvable:$true] %s300
      %s302 = sshll.u32 %s9, 4
      %s303 = int_to_ptr.hbm [resolvable:$true] %s302
      %305 = dma.vmem_to_hbm [thread:$0]  %s301, 128, %s303, [#allocation4]
    $region57: #{tpu_custom_call.1} parent=1 // pred_fallthru
      _
    // Predicated region
    $region58: #{tpu_custom_call.1} parent=1 // pred_check
      _
    $region59: #{tpu_custom_call.1} parent=1 // pred_check_branch
      %307 = sbr.rel (0) target = $region61
    $region60: #{tpu_custom_call.1} parent=1 // pred_region
      %309 = dma.done [#allocation4], 128
    $region61: #{tpu_custom_call.1} parent=1 // pred_fallthru
      _
    %310 = vsyncpa [#allocation3], 1
    %311 = vsyncpa [#allocation6], 1
    %312 = vsyncpa [#allocation9], 1
    %313 = vsyncpa [#allocation4], 1

</llo_original>
